<compile_context>
chip_gen: v6e
topology: v6e:2x2x1
jax: 0.10.0
libtpu: 0.0.40
codegen_flags: <defaults>
</compile_context>

<pallas_src>
import jax
import jax.numpy as jnp
from jax.experimental import pallas as pl
from jax.experimental.pallas import tpu as pltpu

N_SERVO = 8
N_INPUT = 2 * N_SERVO + 1      # 17
N_OUTPUT = 2 * N_SERVO         # 16
N_HIDDEN = 32
N_LSTM = 10
N_LIN = 10
NEG_SLOPE = 0.01               # nn.LeakyReLU() default

H = N_HIDDEN
G = 4 * N_HIDDEN               # 128 gate lanes

# ---- static row offsets inside the packed slabs ----
WIH_OFF = 0                            # weight slab rows [0, 320)
LIN_OFF = N_LSTM * H                   # rows [320, 608)
LINL_OFF = LIN_OFF + (N_LIN - 1) * H   # rows [608, 640)
W_ROWS = LINL_OFF + H                  # 640

GC_OFF = 0                             # const slab rows [0, 10)
C0_OFF = N_LSTM                        # rows [10, 20)
LB_OFF = 2 * N_LSTM                    # rows [20, 29)
LBL_ROW = LB_OFF + (N_LIN - 1)         # row 29
AA_ROW = LBL_ROW + 1                   # row 30
BB_ROW = AA_ROW + 1                    # row 31
C_ROWS = BB_ROW + 1                    # 32


def _net_kernel(x_ref, w_ref, c_ref, out_ref, xpad_ref):
    B = x_ref.shape[0]
    f32, bf16 = jnp.float32, jnp.bfloat16

    # Zero-pad the (B, 17) input into a (B, H) scratch (one masked store).
    xpad_ref[...] = jnp.zeros_like(xpad_ref)
    xpad_ref[:, 0:N_INPUT] = x_ref[...]
    x = xpad_ref[...]                                      # (B, H) f32

    # Per-lane gate affine: a*tanh(z)+b gives [sig(i)|sig(f)|tanh(g)|0].
    a_aff = c_ref[AA_ROW:AA_ROW + 1, :]                    # (1, 4H)
    b_aff = c_ref[BB_ROW:BB_ROW + 1, :]                    # (1, 4H)

    # ---- LSTM stack: only c flows layer-to-layer; h / o-gate are dead. ----
    for i in range(N_LSTM):
        w = w_ref[WIH_OFF + i * H: WIH_OFF + (i + 1) * H, :]   # (H,4H) bf16
        gc = c_ref[GC_OFF + i: GC_OFF + i + 1, :]              # (1,4H) f32
        z = jnp.dot(x.astype(bf16), w, preferred_element_type=f32) + gc
        act = a_aff * jnp.tanh(z) + b_aff                      # one EUP pass
        c0 = c_ref[C0_OFF + i: C0_OFF + i + 1, 0:H]            # (1,H)
        # c_new = sigmoid(f)*c0 + sigmoid(i)*tanh(g)  == next-layer input
        x = act[:, H:2 * H] * c0 + act[:, 0:H] * act[:, 2 * H:3 * H]

    # ---- Linear stack, LeakyReLU after every layer (incl. the last) ----
    for i in range(N_LIN - 1):
        w = w_ref[LIN_OFF + i * H: LIN_OFF + (i + 1) * H, :]   # cols >= H zero
        b = c_ref[LB_OFF + i: LB_OFF + i + 1, 0:H]
        y = jnp.dot(x.astype(bf16), w, preferred_element_type=f32)[:, 0:H] + b
        x = jnp.maximum(y, NEG_SLOPE * y)

    wL = w_ref[LINL_OFF:LINL_OFF + H, :]                       # cols >= 16 zero
    bL = c_ref[LBL_ROW:LBL_ROW + 1, 0:N_OUTPUT]
    y = jnp.dot(x.astype(bf16), wL, preferred_element_type=f32)[:, 0:N_OUTPUT] + bL
    out_ref[...] = jnp.maximum(y, NEG_SLOPE * y).astype(out_ref.dtype)


@jax.jit
def net_forward(x, w_slab, c_slab):
    """x: (B, 17) f32; w_slab: (640,128) bf16; c_slab: (32,128) f32."""
    B = x.shape[0]
    flops = 2 * B * (N_LSTM * H * G + (N_LIN - 1) * H * H + H * N_OUTPUT)
    bytes_acc = (W_ROWS * G * 2) + (C_ROWS * G * 4) + B * (N_INPUT + N_OUTPUT) * 4
    return pl.pallas_call(
        _net_kernel,
        out_shape=jax.ShapeDtypeStruct((B, N_OUTPUT), jnp.float32),
        in_specs=[pl.BlockSpec(memory_space=pltpu.MemorySpace.VMEM)] * 3,
        out_specs=pl.BlockSpec(memory_space=pltpu.MemorySpace.VMEM),
        scratch_shapes=[pltpu.VMEM((B, H), jnp.float32)],
        cost_estimate=pl.CostEstimate(
            flops=flops, transcendentals=B * N_LSTM * G,
            bytes_accessed=bytes_acc),
    )(x, w_slab, c_slab)


def init_params(key):
    """Raw (PyTorch-layout-ish) parameters; weights stored as (in, out)."""
    bound = 1.0 / (H ** 0.5)          # PyTorch default uniform init bound
    keys = iter(jax.random.split(key, 16))

    def u(shape):
        return jax.random.uniform(next(keys), shape, jnp.float32, -bound, bound)

    return {
        "wih0": u((N_INPUT, G)),                  # layer-0 W_ih^T
        "wih": u((N_LSTM - 1, H, G)),             # layers 1..9 W_ih^T
        "whh": u((N_LSTM, H, G)),                 # W_hh^T
        "b_ih": u((N_LSTM, G)),
        "b_hh": u((N_LSTM, G)),
        "h0": jax.random.normal(next(keys), (N_LSTM, H), jnp.float32),
        "c0": jax.random.normal(next(keys), (N_LSTM, H), jnp.float32),
        "lin_w": u((N_LIN - 1, H, H)),
        "lin_b": u((N_LIN - 1, H)),
        "linL_w": u((H, N_OUTPUT)),
        "linL_b": u((N_OUTPUT,)),
    }


def prepare_params(p):
    """One-time prep: build the two packed kernel operands (run once, reuse)."""
    # Fold the 0.5 sigmoid pre-scale into the i/f gate columns (exact in bf16).
    scale = jnp.concatenate([jnp.full((2 * H,), 0.5), jnp.ones((2 * H,))])

    wih0 = jnp.pad(p["wih0"], ((0, H - N_INPUT), (0, 0)))            # (H,4H)
    wih = jnp.concatenate([wih0[None], p["wih"]], axis=0) * scale    # (L,H,4H)

    # Recurrent contribution is constant within one forward: hoist it.
    gconst = (jnp.einsum("lh,lhg->lg", p["h0"], p["whh"],
                         precision=jax.lax.Precision.HIGHEST)
              + p["b_ih"] + p["b_hh"]) * scale                       # (L,4H)

    lin_w = jnp.pad(p["lin_w"], ((0, 0), (0, 0), (0, G - H)))        # (9,H,128)
    linL_w = jnp.pad(p["linL_w"], ((0, 0), (0, G - N_OUTPUT)))       # (H,128)

    w_slab = jnp.concatenate([
        wih.reshape(N_LSTM * H, G),
        lin_w.reshape((N_LIN - 1) * H, G),
        linL_w,
    ], axis=0).astype(jnp.bfloat16)                                  # (640,128)

    a_aff = jnp.concatenate([jnp.full((2 * H,), 0.5), jnp.ones((H,)),
                             jnp.zeros((H,))])
    b_aff = jnp.concatenate([jnp.full((2 * H,), 0.5), jnp.zeros((2 * H,))])

    c_slab = jnp.concatenate([
        gconst,                                                # rows  0..9
        jnp.pad(p["c0"], ((0, 0), (0, G - H))),                # rows 10..19
        jnp.pad(p["lin_b"], ((0, 0), (0, G - H))),             # rows 20..28
        jnp.pad(p["linL_b"], (0, G - N_OUTPUT))[None],         # row  29
        a_aff[None],                                           # row  30
        b_aff[None],                                           # row  31
    ], axis=0).astype(jnp.float32)                             # (32,128)
    return w_slab, c_slab


def net_reference(x, p):
    """Pure-JAX reference (same bf16 MXU weight casts as the kernel)."""
    bf16, f32 = jnp.bfloat16, jnp.float32
    wih0 = jnp.pad(p["wih0"], ((0, H - N_INPUT), (0, 0)))
    wih = jnp.concatenate([wih0[None], p["wih"]], axis=0)
    xb = jnp.pad(x.astype(f32), ((0, 0), (0, H - N_INPUT)))
    for i in range(N_LSTM):
        gc = p["h0"][i] @ p["whh"][i] + p["b_ih"][i] + p["b_hh"][i]
        z = jnp.dot(xb.astype(bf16), wih[i].astype(bf16),
                    preferred_element_type=f32) + gc
        i_g = jax.nn.sigmoid(z[:, 0:H])
        f_g = jax.nn.sigmoid(z[:, H:2 * H])
        g_g = jnp.tanh(z[:, 2 * H:3 * H])
        xb = f_g * p["c0"][i] + i_g * g_g
    lrelu = lambda v: jnp.where(v >= 0, v, NEG_SLOPE * v)
    for i in range(N_LIN - 1):
        xb = lrelu(jnp.dot(xb.astype(bf16), p["lin_w"][i].astype(bf16),
                           preferred_element_type=f32) + p["lin_b"][i])
    xb = lrelu(jnp.dot(xb.astype(bf16), p["linL_w"].astype(bf16),
                       preferred_element_type=f32) + p["linL_b"])
    return xb


if __name__ == "__main__":
    key = jax.random.PRNGKey(0)
    pkey, xkey = jax.random.split(key)

    raw = init_params(pkey)
    w_slab, c_slab = prepare_params(raw)              # one-time param prep
    w_slab, c_slab = jax.block_until_ready((w_slab, c_slab))

    # Module state hi/ci is (1, n_hidden), so forward takes a (1, 17) row.
    # (Kernel also supports B>1 unchanged — batching is the main throughput lever.)
    x = jax.random.normal(xkey, (1, N_INPUT), jnp.float32)

    out = net_forward(x, w_slab, c_slab)
    out = jax.block_until_ready(out)
    assert out.shape == (1, N_OUTPUT) and out.dtype == jnp.float32

    ref = net_reference(x, raw)
    err = float(jnp.max(jnp.abs(out - ref)))
    assert err < 1e-2, f"kernel/reference mismatch: max abs err = {err}"
    print("KERNEL_OK")
</pallas_src>

<mosaic_0001>
module attributes {stable_mosaic.version = 11 : i64} {
  func.func @_net_kernel(%arg0: memref<1x17xf32, #tpu.memory_space<vmem>>, %arg1: memref<640x128xbf16, #tpu.memory_space<vmem>>, %arg2: memref<32x128xf32, #tpu.memory_space<vmem>>, %arg3: memref<1x16xf32, #tpu.memory_space<vmem>>, %arg4: memref<1x32xf32, #tpu.memory_space<vmem>>) attributes {dimension_semantics = [], scalar_prefetch = 0 : i64, scratch_operands = 1 : i64, tpu.core_type = #tpu.core_type<tc>} {
    %cst = arith.constant 0.000000e+00 : f32
    %0 = vector.broadcast %cst : f32 to vector<1x32xf32>
    %c0 = arith.constant 0 : index
    %c0_0 = arith.constant 0 : index
    %1 = vector.load %arg4[%c0, %c0_0] : memref<1x32xf32, #tpu.memory_space<vmem>>, vector<1x32xf32>
    tpu.vector_store %arg4[%c0, %c0_0], %0 {strides = array<i32>} : memref<1x32xf32, #tpu.memory_space<vmem>>, vector<1x32xf32>,
    %c0_1 = arith.constant 0 : index
    %c0_2 = arith.constant 0 : index
    %2 = vector.load %arg0[%c0_1, %c0_2] : memref<1x17xf32, #tpu.memory_space<vmem>>, vector<1x17xf32>
    %c0_3 = arith.constant 0 : index
    %c0_4 = arith.constant 0 : index
    %3 = vector.load %arg4[%c0_3, %c0_4] : memref<1x32xf32, #tpu.memory_space<vmem>>, vector<1x17xf32>
    tpu.vector_store %arg4[%c0_3, %c0_4], %2 {strides = array<i32>} : memref<1x32xf32, #tpu.memory_space<vmem>>, vector<1x17xf32>,
    %c0_5 = arith.constant 0 : index
    %c0_6 = arith.constant 0 : index
    %4 = vector.load %arg4[%c0_5, %c0_6] : memref<1x32xf32, #tpu.memory_space<vmem>>, vector<1x32xf32>
    %c30 = arith.constant 30 : index
    %c0_7 = arith.constant 0 : index
    %5 = vector.load %arg2[%c30, %c0_7] : memref<32x128xf32, #tpu.memory_space<vmem>>, vector<1x128xf32>
    %c31 = arith.constant 31 : index
    %c0_8 = arith.constant 0 : index
    %6 = vector.load %arg2[%c31, %c0_8] : memref<32x128xf32, #tpu.memory_space<vmem>>, vector<1x128xf32>
    %c0_9 = arith.constant 0 : index
    %c0_10 = arith.constant 0 : index
    %7 = vector.load %arg1[%c0_9, %c0_10] : memref<640x128xbf16, #tpu.memory_space<vmem>>, vector<32x128xbf16>
    %c0_11 = arith.constant 0 : index
    %c0_12 = arith.constant 0 : index
    %8 = vector.load %arg2[%c0_11, %c0_12] : memref<32x128xf32, #tpu.memory_space<vmem>>, vector<1x128xf32>
    %9 = arith.truncf %4 : vector<1x32xf32> to vector<1x32xbf16>
    %cst_13 = arith.constant dense<0.000000e+00> : vector<1x128xf32>
    %10 = tpu.matmul %9, %7, %cst_13 {dimension_numbers = #tpu.dot_dimension_numbers<[1], [0], [0], [1], [0, 0, 1, 1], [], []>} : vector<1x32xbf16>, vector<32x128xbf16>, vector<1x128xf32> -> vector<1x128xf32>
    %11 = arith.addf %10, %8 : vector<1x128xf32>
    %12 = math.tanh %11 : vector<1x128xf32>
    %13 = arith.mulf %5, %12 : vector<1x128xf32>
    %14 = arith.addf %13, %6 : vector<1x128xf32>
    %c10 = arith.constant 10 : index
    %c0_14 = arith.constant 0 : index
    %15 = vector.load %arg2[%c10, %c0_14] : memref<32x128xf32, #tpu.memory_space<vmem>>, vector<1x32xf32>
    %16 = vector.extract_strided_slice %14 {offsets = [0, 32], sizes = [1, 32], strides = [1, 1]} : vector<1x128xf32> to vector<1x32xf32>
    %17 = arith.mulf %16, %15 : vector<1x32xf32>
    %18 = vector.extract_strided_slice %14 {offsets = [0, 0], sizes = [1, 32], strides = [1, 1]} : vector<1x128xf32> to vector<1x32xf32>
    %19 = vector.extract_strided_slice %14 {offsets = [0, 64], sizes = [1, 32], strides = [1, 1]} : vector<1x128xf32> to vector<1x32xf32>
    %20 = arith.mulf %18, %19 : vector<1x32xf32>
    %21 = arith.addf %17, %20 : vector<1x32xf32>
    %c32 = arith.constant 32 : index
    %c0_15 = arith.constant 0 : index
    %22 = vector.load %arg1[%c32, %c0_15] : memref<640x128xbf16, #tpu.memory_space<vmem>>, vector<32x128xbf16>
    %c1 = arith.constant 1 : index
    %c0_16 = arith.constant 0 : index
    %23 = vector.load %arg2[%c1, %c0_16] : memref<32x128xf32, #tpu.memory_space<vmem>>, vector<1x128xf32>
    %24 = arith.truncf %21 : vector<1x32xf32> to vector<1x32xbf16>
    %cst_17 = arith.constant dense<0.000000e+00> : vector<1x128xf32>
    %25 = tpu.matmul %24, %22, %cst_17 {dimension_numbers = #tpu.dot_dimension_numbers<[1], [0], [0], [1], [0, 0, 1, 1], [], []>} : vector<1x32xbf16>, vector<32x128xbf16>, vector<1x128xf32> -> vector<1x128xf32>
    %26 = arith.addf %25, %23 : vector<1x128xf32>
    %27 = math.tanh %26 : vector<1x128xf32>
    %28 = arith.mulf %5, %27 : vector<1x128xf32>
    %29 = arith.addf %28, %6 : vector<1x128xf32>
    %c11 = arith.constant 11 : index
    %c0_18 = arith.constant 0 : index
    %30 = vector.load %arg2[%c11, %c0_18] : memref<32x128xf32, #tpu.memory_space<vmem>>, vector<1x32xf32>
    %31 = vector.extract_strided_slice %29 {offsets = [0, 32], sizes = [1, 32], strides = [1, 1]} : vector<1x128xf32> to vector<1x32xf32>
    %32 = arith.mulf %31, %30 : vector<1x32xf32>
    %33 = vector.extract_strided_slice %29 {offsets = [0, 0], sizes = [1, 32], strides = [1, 1]} : vector<1x128xf32> to vector<1x32xf32>
    %34 = vector.extract_strided_slice %29 {offsets = [0, 64], sizes = [1, 32], strides = [1, 1]} : vector<1x128xf32> to vector<1x32xf32>
    %35 = arith.mulf %33, %34 : vector<1x32xf32>
    %36 = arith.addf %32, %35 : vector<1x32xf32>
    %c64 = arith.constant 64 : index
    %c0_19 = arith.constant 0 : index
    %37 = vector.load %arg1[%c64, %c0_19] : memref<640x128xbf16, #tpu.memory_space<vmem>>, vector<32x128xbf16>
    %c2 = arith.constant 2 : index
    %c0_20 = arith.constant 0 : index
    %38 = vector.load %arg2[%c2, %c0_20] : memref<32x128xf32, #tpu.memory_space<vmem>>, vector<1x128xf32>
    %39 = arith.truncf %36 : vector<1x32xf32> to vector<1x32xbf16>
    %cst_21 = arith.constant dense<0.000000e+00> : vector<1x128xf32>
    %40 = tpu.matmul %39, %37, %cst_21 {dimension_numbers = #tpu.dot_dimension_numbers<[1], [0], [0], [1], [0, 0, 1, 1], [], []>} : vector<1x32xbf16>, vector<32x128xbf16>, vector<1x128xf32> -> vector<1x128xf32>
    %41 = arith.addf %40, %38 : vector<1x128xf32>
    %42 = math.tanh %41 : vector<1x128xf32>
    %43 = arith.mulf %5, %42 : vector<1x128xf32>
    %44 = arith.addf %43, %6 : vector<1x128xf32>
    %c12 = arith.constant 12 : index
    %c0_22 = arith.constant 0 : index
    %45 = vector.load %arg2[%c12, %c0_22] : memref<32x128xf32, #tpu.memory_space<vmem>>, vector<1x32xf32>
    %46 = vector.extract_strided_slice %44 {offsets = [0, 32], sizes = [1, 32], strides = [1, 1]} : vector<1x128xf32> to vector<1x32xf32>
    %47 = arith.mulf %46, %45 : vector<1x32xf32>
    %48 = vector.extract_strided_slice %44 {offsets = [0, 0], sizes = [1, 32], strides = [1, 1]} : vector<1x128xf32> to vector<1x32xf32>
    %49 = vector.extract_strided_slice %44 {offsets = [0, 64], sizes = [1, 32], strides = [1, 1]} : vector<1x128xf32> to vector<1x32xf32>
    %50 = arith.mulf %48, %49 : vector<1x32xf32>
    %51 = arith.addf %47, %50 : vector<1x32xf32>
    %c96 = arith.constant 96 : index
    %c0_23 = arith.constant 0 : index
    %52 = vector.load %arg1[%c96, %c0_23] : memref<640x128xbf16, #tpu.memory_space<vmem>>, vector<32x128xbf16>
    %c3 = arith.constant 3 : index
    %c0_24 = arith.constant 0 : index
    %53 = vector.load %arg2[%c3, %c0_24] : memref<32x128xf32, #tpu.memory_space<vmem>>, vector<1x128xf32>
    %54 = arith.truncf %51 : vector<1x32xf32> to vector<1x32xbf16>
    %cst_25 = arith.constant dense<0.000000e+00> : vector<1x128xf32>
    %55 = tpu.matmul %54, %52, %cst_25 {dimension_numbers = #tpu.dot_dimension_numbers<[1], [0], [0], [1], [0, 0, 1, 1], [], []>} : vector<1x32xbf16>, vector<32x128xbf16>, vector<1x128xf32> -> vector<1x128xf32>
    %56 = arith.addf %55, %53 : vector<1x128xf32>
    %57 = math.tanh %56 : vector<1x128xf32>
    %58 = arith.mulf %5, %57 : vector<1x128xf32>
    %59 = arith.addf %58, %6 : vector<1x128xf32>
    %c13 = arith.constant 13 : index
    %c0_26 = arith.constant 0 : index
    %60 = vector.load %arg2[%c13, %c0_26] : memref<32x128xf32, #tpu.memory_space<vmem>>, vector<1x32xf32>
    %61 = vector.extract_strided_slice %59 {offsets = [0, 32], sizes = [1, 32], strides = [1, 1]} : vector<1x128xf32> to vector<1x32xf32>
    %62 = arith.mulf %61, %60 : vector<1x32xf32>
    %63 = vector.extract_strided_slice %59 {offsets = [0, 0], sizes = [1, 32], strides = [1, 1]} : vector<1x128xf32> to vector<1x32xf32>
    %64 = vector.extract_strided_slice %59 {offsets = [0, 64], sizes = [1, 32], strides = [1, 1]} : vector<1x128xf32> to vector<1x32xf32>
    %65 = arith.mulf %63, %64 : vector<1x32xf32>
    %66 = arith.addf %62, %65 : vector<1x32xf32>
    %c128 = arith.constant 128 : index
    %c0_27 = arith.constant 0 : index
    %67 = vector.load %arg1[%c128, %c0_27] : memref<640x128xbf16, #tpu.memory_space<vmem>>, vector<32x128xbf16>
    %c4 = arith.constant 4 : index
    %c0_28 = arith.constant 0 : index
    %68 = vector.load %arg2[%c4, %c0_28] : memref<32x128xf32, #tpu.memory_space<vmem>>, vector<1x128xf32>
    %69 = arith.truncf %66 : vector<1x32xf32> to vector<1x32xbf16>
    %cst_29 = arith.constant dense<0.000000e+00> : vector<1x128xf32>
    %70 = tpu.matmul %69, %67, %cst_29 {dimension_numbers = #tpu.dot_dimension_numbers<[1], [0], [0], [1], [0, 0, 1, 1], [], []>} : vector<1x32xbf16>, vector<32x128xbf16>, vector<1x128xf32> -> vector<1x128xf32>
    %71 = arith.addf %70, %68 : vector<1x128xf32>
    %72 = math.tanh %71 : vector<1x128xf32>
    %73 = arith.mulf %5, %72 : vector<1x128xf32>
    %74 = arith.addf %73, %6 : vector<1x128xf32>
    %c14 = arith.constant 14 : index
    %c0_30 = arith.constant 0 : index
    %75 = vector.load %arg2[%c14, %c0_30] : memref<32x128xf32, #tpu.memory_space<vmem>>, vector<1x32xf32>
    %76 = vector.extract_strided_slice %74 {offsets = [0, 32], sizes = [1, 32], strides = [1, 1]} : vector<1x128xf32> to vector<1x32xf32>
    %77 = arith.mulf %76, %75 : vector<1x32xf32>
    %78 = vector.extract_strided_slice %74 {offsets = [0, 0], sizes = [1, 32], strides = [1, 1]} : vector<1x128xf32> to vector<1x32xf32>
    %79 = vector.extract_strided_slice %74 {offsets = [0, 64], sizes = [1, 32], strides = [1, 1]} : vector<1x128xf32> to vector<1x32xf32>
    %80 = arith.mulf %78, %79 : vector<1x32xf32>
    %81 = arith.addf %77, %80 : vector<1x32xf32>
    %c160 = arith.constant 160 : index
    %c0_31 = arith.constant 0 : index
    %82 = vector.load %arg1[%c160, %c0_31] : memref<640x128xbf16, #tpu.memory_space<vmem>>, vector<32x128xbf16>
    %c5 = arith.constant 5 : index
    %c0_32 = arith.constant 0 : index
    %83 = vector.load %arg2[%c5, %c0_32] : memref<32x128xf32, #tpu.memory_space<vmem>>, vector<1x128xf32>
    %84 = arith.truncf %81 : vector<1x32xf32> to vector<1x32xbf16>
    %cst_33 = arith.constant dense<0.000000e+00> : vector<1x128xf32>
    %85 = tpu.matmul %84, %82, %cst_33 {dimension_numbers = #tpu.dot_dimension_numbers<[1], [0], [0], [1], [0, 0, 1, 1], [], []>} : vector<1x32xbf16>, vector<32x128xbf16>, vector<1x128xf32> -> vector<1x128xf32>
    %86 = arith.addf %85, %83 : vector<1x128xf32>
    %87 = math.tanh %86 : vector<1x128xf32>
    %88 = arith.mulf %5, %87 : vector<1x128xf32>
    %89 = arith.addf %88, %6 : vector<1x128xf32>
    %c15 = arith.constant 15 : index
    %c0_34 = arith.constant 0 : index
    %90 = vector.load %arg2[%c15, %c0_34] : memref<32x128xf32, #tpu.memory_space<vmem>>, vector<1x32xf32>
    %91 = vector.extract_strided_slice %89 {offsets = [0, 32], sizes = [1, 32], strides = [1, 1]} : vector<1x128xf32> to vector<1x32xf32>
    %92 = arith.mulf %91, %90 : vector<1x32xf32>
    %93 = vector.extract_strided_slice %89 {offsets = [0, 0], sizes = [1, 32], strides = [1, 1]} : vector<1x128xf32> to vector<1x32xf32>
    %94 = vector.extract_strided_slice %89 {offsets = [0, 64], sizes = [1, 32], strides = [1, 1]} : vector<1x128xf32> to vector<1x32xf32>
    %95 = arith.mulf %93, %94 : vector<1x32xf32>
    %96 = arith.addf %92, %95 : vector<1x32xf32>
    %c192 = arith.constant 192 : index
    %c0_35 = arith.constant 0 : index
    %97 = vector.load %arg1[%c192, %c0_35] : memref<640x128xbf16, #tpu.memory_space<vmem>>, vector<32x128xbf16>
    %c6 = arith.constant 6 : index
    %c0_36 = arith.constant 0 : index
    %98 = vector.load %arg2[%c6, %c0_36] : memref<32x128xf32, #tpu.memory_space<vmem>>, vector<1x128xf32>
    %99 = arith.truncf %96 : vector<1x32xf32> to vector<1x32xbf16>
    %cst_37 = arith.constant dense<0.000000e+00> : vector<1x128xf32>
    %100 = tpu.matmul %99, %97, %cst_37 {dimension_numbers = #tpu.dot_dimension_numbers<[1], [0], [0], [1], [0, 0, 1, 1], [], []>} : vector<1x32xbf16>, vector<32x128xbf16>, vector<1x128xf32> -> vector<1x128xf32>
    %101 = arith.addf %100, %98 : vector<1x128xf32>
    %102 = math.tanh %101 : vector<1x128xf32>
    %103 = arith.mulf %5, %102 : vector<1x128xf32>
    %104 = arith.addf %103, %6 : vector<1x128xf32>
    %c16 = arith.constant 16 : index
    %c0_38 = arith.constant 0 : index
    %105 = vector.load %arg2[%c16, %c0_38] : memref<32x128xf32, #tpu.memory_space<vmem>>, vector<1x32xf32>
    %106 = vector.extract_strided_slice %104 {offsets = [0, 32], sizes = [1, 32], strides = [1, 1]} : vector<1x128xf32> to vector<1x32xf32>
    %107 = arith.mulf %106, %105 : vector<1x32xf32>
    %108 = vector.extract_strided_slice %104 {offsets = [0, 0], sizes = [1, 32], strides = [1, 1]} : vector<1x128xf32> to vector<1x32xf32>
    %109 = vector.extract_strided_slice %104 {offsets = [0, 64], sizes = [1, 32], strides = [1, 1]} : vector<1x128xf32> to vector<1x32xf32>
    %110 = arith.mulf %108, %109 : vector<1x32xf32>
    %111 = arith.addf %107, %110 : vector<1x32xf32>
    %c224 = arith.constant 224 : index
    %c0_39 = arith.constant 0 : index
    %112 = vector.load %arg1[%c224, %c0_39] : memref<640x128xbf16, #tpu.memory_space<vmem>>, vector<32x128xbf16>
    %c7 = arith.constant 7 : index
    %c0_40 = arith.constant 0 : index
    %113 = vector.load %arg2[%c7, %c0_40] : memref<32x128xf32, #tpu.memory_space<vmem>>, vector<1x128xf32>
    %114 = arith.truncf %111 : vector<1x32xf32> to vector<1x32xbf16>
    %cst_41 = arith.constant dense<0.000000e+00> : vector<1x128xf32>
    %115 = tpu.matmul %114, %112, %cst_41 {dimension_numbers = #tpu.dot_dimension_numbers<[1], [0], [0], [1], [0, 0, 1, 1], [], []>} : vector<1x32xbf16>, vector<32x128xbf16>, vector<1x128xf32> -> vector<1x128xf32>
    %116 = arith.addf %115, %113 : vector<1x128xf32>
    %117 = math.tanh %116 : vector<1x128xf32>
    %118 = arith.mulf %5, %117 : vector<1x128xf32>
    %119 = arith.addf %118, %6 : vector<1x128xf32>
    %c17 = arith.constant 17 : index
    %c0_42 = arith.constant 0 : index
    %120 = vector.load %arg2[%c17, %c0_42] : memref<32x128xf32, #tpu.memory_space<vmem>>, vector<1x32xf32>
    %121 = vector.extract_strided_slice %119 {offsets = [0, 32], sizes = [1, 32], strides = [1, 1]} : vector<1x128xf32> to vector<1x32xf32>
    %122 = arith.mulf %121, %120 : vector<1x32xf32>
    %123 = vector.extract_strided_slice %119 {offsets = [0, 0], sizes = [1, 32], strides = [1, 1]} : vector<1x128xf32> to vector<1x32xf32>
    %124 = vector.extract_strided_slice %119 {offsets = [0, 64], sizes = [1, 32], strides = [1, 1]} : vector<1x128xf32> to vector<1x32xf32>
    %125 = arith.mulf %123, %124 : vector<1x32xf32>
    %126 = arith.addf %122, %125 : vector<1x32xf32>
    %c256 = arith.constant 256 : index
    %c0_43 = arith.constant 0 : index
    %127 = vector.load %arg1[%c256, %c0_43] : memref<640x128xbf16, #tpu.memory_space<vmem>>, vector<32x128xbf16>
    %c8 = arith.constant 8 : index
    %c0_44 = arith.constant 0 : index
    %128 = vector.load %arg2[%c8, %c0_44] : memref<32x128xf32, #tpu.memory_space<vmem>>, vector<1x128xf32>
    %129 = arith.truncf %126 : vector<1x32xf32> to vector<1x32xbf16>
    %cst_45 = arith.constant dense<0.000000e+00> : vector<1x128xf32>
    %130 = tpu.matmul %129, %127, %cst_45 {dimension_numbers = #tpu.dot_dimension_numbers<[1], [0], [0], [1], [0, 0, 1, 1], [], []>} : vector<1x32xbf16>, vector<32x128xbf16>, vector<1x128xf32> -> vector<1x128xf32>
    %131 = arith.addf %130, %128 : vector<1x128xf32>
    %132 = math.tanh %131 : vector<1x128xf32>
    %133 = arith.mulf %5, %132 : vector<1x128xf32>
    %134 = arith.addf %133, %6 : vector<1x128xf32>
    %c18 = arith.constant 18 : index
    %c0_46 = arith.constant 0 : index
    %135 = vector.load %arg2[%c18, %c0_46] : memref<32x128xf32, #tpu.memory_space<vmem>>, vector<1x32xf32>
    %136 = vector.extract_strided_slice %134 {offsets = [0, 32], sizes = [1, 32], strides = [1, 1]} : vector<1x128xf32> to vector<1x32xf32>
    %137 = arith.mulf %136, %135 : vector<1x32xf32>
    %138 = vector.extract_strided_slice %134 {offsets = [0, 0], sizes = [1, 32], strides = [1, 1]} : vector<1x128xf32> to vector<1x32xf32>
    %139 = vector.extract_strided_slice %134 {offsets = [0, 64], sizes = [1, 32], strides = [1, 1]} : vector<1x128xf32> to vector<1x32xf32>
    %140 = arith.mulf %138, %139 : vector<1x32xf32>
    %141 = arith.addf %137, %140 : vector<1x32xf32>
    %c288 = arith.constant 288 : index
    %c0_47 = arith.constant 0 : index
    %142 = vector.load %arg1[%c288, %c0_47] : memref<640x128xbf16, #tpu.memory_space<vmem>>, vector<32x128xbf16>
    %c9 = arith.constant 9 : index
    %c0_48 = arith.constant 0 : index
    %143 = vector.load %arg2[%c9, %c0_48] : memref<32x128xf32, #tpu.memory_space<vmem>>, vector<1x128xf32>
    %144 = arith.truncf %141 : vector<1x32xf32> to vector<1x32xbf16>
    %cst_49 = arith.constant dense<0.000000e+00> : vector<1x128xf32>
    %145 = tpu.matmul %144, %142, %cst_49 {dimension_numbers = #tpu.dot_dimension_numbers<[1], [0], [0], [1], [0, 0, 1, 1], [], []>} : vector<1x32xbf16>, vector<32x128xbf16>, vector<1x128xf32> -> vector<1x128xf32>
    %146 = arith.addf %145, %143 : vector<1x128xf32>
    %147 = math.tanh %146 : vector<1x128xf32>
    %148 = arith.mulf %5, %147 : vector<1x128xf32>
    %149 = arith.addf %148, %6 : vector<1x128xf32>
    %c19 = arith.constant 19 : index
    %c0_50 = arith.constant 0 : index
    %150 = vector.load %arg2[%c19, %c0_50] : memref<32x128xf32, #tpu.memory_space<vmem>>, vector<1x32xf32>
    %151 = vector.extract_strided_slice %149 {offsets = [0, 32], sizes = [1, 32], strides = [1, 1]} : vector<1x128xf32> to vector<1x32xf32>
    %152 = arith.mulf %151, %150 : vector<1x32xf32>
    %153 = vector.extract_strided_slice %149 {offsets = [0, 0], sizes = [1, 32], strides = [1, 1]} : vector<1x128xf32> to vector<1x32xf32>
    %154 = vector.extract_strided_slice %149 {offsets = [0, 64], sizes = [1, 32], strides = [1, 1]} : vector<1x128xf32> to vector<1x32xf32>
    %155 = arith.mulf %153, %154 : vector<1x32xf32>
    %156 = arith.addf %152, %155 : vector<1x32xf32>
    %c320 = arith.constant 320 : index
    %c0_51 = arith.constant 0 : index
    %157 = vector.load %arg1[%c320, %c0_51] : memref<640x128xbf16, #tpu.memory_space<vmem>>, vector<32x128xbf16>
    %c20 = arith.constant 20 : index
    %c0_52 = arith.constant 0 : index
    %158 = vector.load %arg2[%c20, %c0_52] : memref<32x128xf32, #tpu.memory_space<vmem>>, vector<1x32xf32>
    %159 = arith.truncf %156 : vector<1x32xf32> to vector<1x32xbf16>
    %cst_53 = arith.constant dense<0.000000e+00> : vector<1x128xf32>
    %160 = tpu.matmul %159, %157, %cst_53 {dimension_numbers = #tpu.dot_dimension_numbers<[1], [0], [0], [1], [0, 0, 1, 1], [], []>} : vector<1x32xbf16>, vector<32x128xbf16>, vector<1x128xf32> -> vector<1x128xf32>
    %161 = vector.extract_strided_slice %160 {offsets = [0, 0], sizes = [1, 32], strides = [1, 1]} : vector<1x128xf32> to vector<1x32xf32>
    %162 = arith.addf %161, %158 : vector<1x32xf32>
    %cst_54 = arith.constant 0.00999999977 : f32
    %163 = vector.broadcast %cst_54 : f32 to vector<1x32xf32>
    %164 = arith.mulf %163, %162 : vector<1x32xf32>
    %165 = arith.maximumf %162, %164 : vector<1x32xf32>
    %c352 = arith.constant 352 : index
    %c0_55 = arith.constant 0 : index
    %166 = vector.load %arg1[%c352, %c0_55] : memref<640x128xbf16, #tpu.memory_space<vmem>>, vector<32x128xbf16>
    %c21 = arith.constant 21 : index
    %c0_56 = arith.constant 0 : index
    %167 = vector.load %arg2[%c21, %c0_56] : memref<32x128xf32, #tpu.memory_space<vmem>>, vector<1x32xf32>
    %168 = arith.truncf %165 : vector<1x32xf32> to vector<1x32xbf16>
    %cst_57 = arith.constant dense<0.000000e+00> : vector<1x128xf32>
    %169 = tpu.matmul %168, %166, %cst_57 {dimension_numbers = #tpu.dot_dimension_numbers<[1], [0], [0], [1], [0, 0, 1, 1], [], []>} : vector<1x32xbf16>, vector<32x128xbf16>, vector<1x128xf32> -> vector<1x128xf32>
    %170 = vector.extract_strided_slice %169 {offsets = [0, 0], sizes = [1, 32], strides = [1, 1]} : vector<1x128xf32> to vector<1x32xf32>
    %171 = arith.addf %170, %167 : vector<1x32xf32>
    %cst_58 = arith.constant 0.00999999977 : f32
    %172 = vector.broadcast %cst_58 : f32 to vector<1x32xf32>
    %173 = arith.mulf %172, %171 : vector<1x32xf32>
    %174 = arith.maximumf %171, %173 : vector<1x32xf32>
    %c384 = arith.constant 384 : index
    %c0_59 = arith.constant 0 : index
    %175 = vector.load %arg1[%c384, %c0_59] : memref<640x128xbf16, #tpu.memory_space<vmem>>, vector<32x128xbf16>
    %c22 = arith.constant 22 : index
    %c0_60 = arith.constant 0 : index
    %176 = vector.load %arg2[%c22, %c0_60] : memref<32x128xf32, #tpu.memory_space<vmem>>, vector<1x32xf32>
    %177 = arith.truncf %174 : vector<1x32xf32> to vector<1x32xbf16>
    %cst_61 = arith.constant dense<0.000000e+00> : vector<1x128xf32>
    %178 = tpu.matmul %177, %175, %cst_61 {dimension_numbers = #tpu.dot_dimension_numbers<[1], [0], [0], [1], [0, 0, 1, 1], [], []>} : vector<1x32xbf16>, vector<32x128xbf16>, vector<1x128xf32> -> vector<1x128xf32>
    %179 = vector.extract_strided_slice %178 {offsets = [0, 0], sizes = [1, 32], strides = [1, 1]} : vector<1x128xf32> to vector<1x32xf32>
    %180 = arith.addf %179, %176 : vector<1x32xf32>
    %cst_62 = arith.constant 0.00999999977 : f32
    %181 = vector.broadcast %cst_62 : f32 to vector<1x32xf32>
    %182 = arith.mulf %181, %180 : vector<1x32xf32>
    %183 = arith.maximumf %180, %182 : vector<1x32xf32>
    %c416 = arith.constant 416 : index
    %c0_63 = arith.constant 0 : index
    %184 = vector.load %arg1[%c416, %c0_63] : memref<640x128xbf16, #tpu.memory_space<vmem>>, vector<32x128xbf16>
    %c23 = arith.constant 23 : index
    %c0_64 = arith.constant 0 : index
    %185 = vector.load %arg2[%c23, %c0_64] : memref<32x128xf32, #tpu.memory_space<vmem>>, vector<1x32xf32>
    %186 = arith.truncf %183 : vector<1x32xf32> to vector<1x32xbf16>
    %cst_65 = arith.constant dense<0.000000e+00> : vector<1x128xf32>
    %187 = tpu.matmul %186, %184, %cst_65 {dimension_numbers = #tpu.dot_dimension_numbers<[1], [0], [0], [1], [0, 0, 1, 1], [], []>} : vector<1x32xbf16>, vector<32x128xbf16>, vector<1x128xf32> -> vector<1x128xf32>
    %188 = vector.extract_strided_slice %187 {offsets = [0, 0], sizes = [1, 32], strides = [1, 1]} : vector<1x128xf32> to vector<1x32xf32>
    %189 = arith.addf %188, %185 : vector<1x32xf32>
    %cst_66 = arith.constant 0.00999999977 : f32
    %190 = vector.broadcast %cst_66 : f32 to vector<1x32xf32>
    %191 = arith.mulf %190, %189 : vector<1x32xf32>
    %192 = arith.maximumf %189, %191 : vector<1x32xf32>
    %c448 = arith.constant 448 : index
    %c0_67 = arith.constant 0 : index
    %193 = vector.load %arg1[%c448, %c0_67] : memref<640x128xbf16, #tpu.memory_space<vmem>>, vector<32x128xbf16>
    %c24 = arith.constant 24 : index
    %c0_68 = arith.constant 0 : index
    %194 = vector.load %arg2[%c24, %c0_68] : memref<32x128xf32, #tpu.memory_space<vmem>>, vector<1x32xf32>
    %195 = arith.truncf %192 : vector<1x32xf32> to vector<1x32xbf16>
    %cst_69 = arith.constant dense<0.000000e+00> : vector<1x128xf32>
    %196 = tpu.matmul %195, %193, %cst_69 {dimension_numbers = #tpu.dot_dimension_numbers<[1], [0], [0], [1], [0, 0, 1, 1], [], []>} : vector<1x32xbf16>, vector<32x128xbf16>, vector<1x128xf32> -> vector<1x128xf32>
    %197 = vector.extract_strided_slice %196 {offsets = [0, 0], sizes = [1, 32], strides = [1, 1]} : vector<1x128xf32> to vector<1x32xf32>
    %198 = arith.addf %197, %194 : vector<1x32xf32>
    %cst_70 = arith.constant 0.00999999977 : f32
    %199 = vector.broadcast %cst_70 : f32 to vector<1x32xf32>
    %200 = arith.mulf %199, %198 : vector<1x32xf32>
    %201 = arith.maximumf %198, %200 : vector<1x32xf32>
    %c480 = arith.constant 480 : index
    %c0_71 = arith.constant 0 : index
    %202 = vector.load %arg1[%c480, %c0_71] : memref<640x128xbf16, #tpu.memory_space<vmem>>, vector<32x128xbf16>
    %c25 = arith.constant 25 : index
    %c0_72 = arith.constant 0 : index
    %203 = vector.load %arg2[%c25, %c0_72] : memref<32x128xf32, #tpu.memory_space<vmem>>, vector<1x32xf32>
    %204 = arith.truncf %201 : vector<1x32xf32> to vector<1x32xbf16>
    %cst_73 = arith.constant dense<0.000000e+00> : vector<1x128xf32>
    %205 = tpu.matmul %204, %202, %cst_73 {dimension_numbers = #tpu.dot_dimension_numbers<[1], [0], [0], [1], [0, 0, 1, 1], [], []>} : vector<1x32xbf16>, vector<32x128xbf16>, vector<1x128xf32> -> vector<1x128xf32>
    %206 = vector.extract_strided_slice %205 {offsets = [0, 0], sizes = [1, 32], strides = [1, 1]} : vector<1x128xf32> to vector<1x32xf32>
    %207 = arith.addf %206, %203 : vector<1x32xf32>
    %cst_74 = arith.constant 0.00999999977 : f32
    %208 = vector.broadcast %cst_74 : f32 to vector<1x32xf32>
    %209 = arith.mulf %208, %207 : vector<1x32xf32>
    %210 = arith.maximumf %207, %209 : vector<1x32xf32>
    %c512 = arith.constant 512 : index
    %c0_75 = arith.constant 0 : index
    %211 = vector.load %arg1[%c512, %c0_75] : memref<640x128xbf16, #tpu.memory_space<vmem>>, vector<32x128xbf16>
    %c26 = arith.constant 26 : index
    %c0_76 = arith.constant 0 : index
    %212 = vector.load %arg2[%c26, %c0_76] : memref<32x128xf32, #tpu.memory_space<vmem>>, vector<1x32xf32>
    %213 = arith.truncf %210 : vector<1x32xf32> to vector<1x32xbf16>
    %cst_77 = arith.constant dense<0.000000e+00> : vector<1x128xf32>
    %214 = tpu.matmul %213, %211, %cst_77 {dimension_numbers = #tpu.dot_dimension_numbers<[1], [0], [0], [1], [0, 0, 1, 1], [], []>} : vector<1x32xbf16>, vector<32x128xbf16>, vector<1x128xf32> -> vector<1x128xf32>
    %215 = vector.extract_strided_slice %214 {offsets = [0, 0], sizes = [1, 32], strides = [1, 1]} : vector<1x128xf32> to vector<1x32xf32>
    %216 = arith.addf %215, %212 : vector<1x32xf32>
    %cst_78 = arith.constant 0.00999999977 : f32
    %217 = vector.broadcast %cst_78 : f32 to vector<1x32xf32>
    %218 = arith.mulf %217, %216 : vector<1x32xf32>
    %219 = arith.maximumf %216, %218 : vector<1x32xf32>
    %c544 = arith.constant 544 : index
    %c0_79 = arith.constant 0 : index
    %220 = vector.load %arg1[%c544, %c0_79] : memref<640x128xbf16, #tpu.memory_space<vmem>>, vector<32x128xbf16>
    %c27 = arith.constant 27 : index
    %c0_80 = arith.constant 0 : index
    %221 = vector.load %arg2[%c27, %c0_80] : memref<32x128xf32, #tpu.memory_space<vmem>>, vector<1x32xf32>
    %222 = arith.truncf %219 : vector<1x32xf32> to vector<1x32xbf16>
    %cst_81 = arith.constant dense<0.000000e+00> : vector<1x128xf32>
    %223 = tpu.matmul %222, %220, %cst_81 {dimension_numbers = #tpu.dot_dimension_numbers<[1], [0], [0], [1], [0, 0, 1, 1], [], []>} : vector<1x32xbf16>, vector<32x128xbf16>, vector<1x128xf32> -> vector<1x128xf32>
    %224 = vector.extract_strided_slice %223 {offsets = [0, 0], sizes = [1, 32], strides = [1, 1]} : vector<1x128xf32> to vector<1x32xf32>
    %225 = arith.addf %224, %221 : vector<1x32xf32>
    %cst_82 = arith.constant 0.00999999977 : f32
    %226 = vector.broadcast %cst_82 : f32 to vector<1x32xf32>
    %227 = arith.mulf %226, %225 : vector<1x32xf32>
    %228 = arith.maximumf %225, %227 : vector<1x32xf32>
    %c576 = arith.constant 576 : index
    %c0_83 = arith.constant 0 : index
    %229 = vector.load %arg1[%c576, %c0_83] : memref<640x128xbf16, #tpu.memory_space<vmem>>, vector<32x128xbf16>
    %c28 = arith.constant 28 : index
    %c0_84 = arith.constant 0 : index
    %230 = vector.load %arg2[%c28, %c0_84] : memref<32x128xf32, #tpu.memory_space<vmem>>, vector<1x32xf32>
    %231 = arith.truncf %228 : vector<1x32xf32> to vector<1x32xbf16>
    %cst_85 = arith.constant dense<0.000000e+00> : vector<1x128xf32>
    %232 = tpu.matmul %231, %229, %cst_85 {dimension_numbers = #tpu.dot_dimension_numbers<[1], [0], [0], [1], [0, 0, 1, 1], [], []>} : vector<1x32xbf16>, vector<32x128xbf16>, vector<1x128xf32> -> vector<1x128xf32>
    %233 = vector.extract_strided_slice %232 {offsets = [0, 0], sizes = [1, 32], strides = [1, 1]} : vector<1x128xf32> to vector<1x32xf32>
    %234 = arith.addf %233, %230 : vector<1x32xf32>
    %cst_86 = arith.constant 0.00999999977 : f32
    %235 = vector.broadcast %cst_86 : f32 to vector<1x32xf32>
    %236 = arith.mulf %235, %234 : vector<1x32xf32>
    %237 = arith.maximumf %234, %236 : vector<1x32xf32>
    %c608 = arith.constant 608 : index
    %c0_87 = arith.constant 0 : index
    %238 = vector.load %arg1[%c608, %c0_87] : memref<640x128xbf16, #tpu.memory_space<vmem>>, vector<32x128xbf16>
    %c29 = arith.constant 29 : index
    %c0_88 = arith.constant 0 : index
    %239 = vector.load %arg2[%c29, %c0_88] : memref<32x128xf32, #tpu.memory_space<vmem>>, vector<1x16xf32>
    %240 = arith.truncf %237 : vector<1x32xf32> to vector<1x32xbf16>
    %cst_89 = arith.constant dense<0.000000e+00> : vector<1x128xf32>
    %241 = tpu.matmul %240, %238, %cst_89 {dimension_numbers = #tpu.dot_dimension_numbers<[1], [0], [0], [1], [0, 0, 1, 1], [], []>} : vector<1x32xbf16>, vector<32x128xbf16>, vector<1x128xf32> -> vector<1x128xf32>
    %242 = vector.extract_strided_slice %241 {offsets = [0, 0], sizes = [1, 16], strides = [1, 1]} : vector<1x128xf32> to vector<1x16xf32>
    %243 = arith.addf %242, %239 : vector<1x16xf32>
    %cst_90 = arith.constant 0.00999999977 : f32
    %244 = vector.broadcast %cst_90 : f32 to vector<1x16xf32>
    %245 = arith.mulf %244, %243 : vector<1x16xf32>
    %246 = arith.maximumf %243, %245 : vector<1x16xf32>
    %c0_91 = arith.constant 0 : index
    %c0_92 = arith.constant 0 : index
    %247 = vector.load %arg3[%c0_91, %c0_92] : memref<1x16xf32, #tpu.memory_space<vmem>>, vector<1x16xf32>
    tpu.vector_store %arg3[%c0_91, %c0_92], %246 {strides = array<i32>} : memref<1x16xf32, #tpu.memory_space<vmem>>, vector<1x16xf32>,
    return
  }
}

</mosaic_0001>

<llo_original>
// kernel: net_forward.1
$region0: #{net_forward.1}
  #allocation0 [shape = 'u32[]', space=smem, size = 0x4, offset = 0x4, fixed_abs, tag = 'smem constant byte address 0x4 - core index']
  #allocation1 [shape = 'u32[144,128]{1,0:T(1,128)}', space=vmem, size = 0x12000, scoped, tag = 'internal scratch']
  #allocation2 [shape = 'f32[1,32]{1,0:T(1,128)}', space=vmem, size = 0x200, scoped, tag = 'scratch operand']
  %s0 = inlined_call_operand.hbm [shape: f32[1,17], index: 0, kind: input, shape index: {}]
  %s1 = inlined_call_operand.hbm [shape: bf16[640,128], index: 1, kind: input, shape index: {}]
  %s2 = inlined_call_operand.hbm [shape: f32[32,128], index: 2, kind: input, shape index: {}]
  %s3 = inlined_call_operand.hbm [shape: f32[1,16], index: 3, kind: output, shape index: {}]
  %s4 = sld [smem:[#allocation0]]
  $region34: #{net_forward.1} parent=0
    _
  %s6 = ssub.s32 1, %s4
  %s7 = scalar_select 0, %s6, %s4
  $region1: #{net_forward.1} parent=0
    #allocation3 [shape = 'u8[512]{0}', space=vmem, size = 0x400, scoped, tag = 'input window, operand 0, single buffered']
    #allocation4 [shape = 's32[1]{0}', space=sflag, size = 0x4, scoped, tag = 'scoped memory for net_forward.1']
    #allocation5 [shape = 's32[1]{0}', space=sflag, size = 0x4, scoped, tag = 'scoped memory for net_forward.1']
    #allocation6 [shape = 'u8[163840]{0}', space=vmem, size = 0x28000, scoped, tag = 'input window, operand 1, single buffered']
    #allocation7 [shape = 's32[1]{0}', space=sflag, size = 0x4, scoped, tag = 'scoped memory for net_forward.1']
    #allocation8 [shape = 'u8[16384]{0}', space=vmem, size = 0x4000, scoped, tag = 'input window, operand 2, single buffered']
    #allocation9 [shape = 'u8[512]{0}', space=vmem, size = 0x400, scoped, tag = 'output window, operand 0, single buffered']
    %8 = vsyncpa [#allocation4], 0
    %9 = vsyncpa [#allocation7], 0
    %10 = vsyncpa [#allocation5], 0
    // Predicated region
    $region2: #{net_forward.1} parent=1 // pred_check
      _
    $region3: #{net_forward.1} parent=1 // pred_check_branch
      %12 = sbr.rel (0) target = $region5
    $region4: #{net_forward.1} parent=1 // pred_region
      %s14 = ssub.s32 16, 16
      %15 = vsyncadd [#allocation4], %s14
      %s17 = sshll.u32 [#allocation3], 4
      %s18 = int_to_ptr.vmem [resolvable:$true] %s17
      %20 = dma.hbm_to_vmem [thread:$0]  %s0, 16, %s18, [#allocation4]
    $region5: #{net_forward.1} parent=1 // pred_fallthru
      _
    // Predicated region
    $region6: #{net_forward.1} parent=1 // pred_check
      _
    $region7: #{net_forward.1} parent=1 // pred_check_branch
      %22 = sbr.rel (0) target = $region9
    $region8: #{net_forward.1} parent=1 // pred_region
      %s24 = ssub.s32 5120, 5120
      %25 = vsyncadd [#allocation7], %s24
      %s26 = sshll.u32 [#allocation6], 4
      %s27 = int_to_ptr.vmem [resolvable:$true] %s26
      %32 = dma.hbm_to_vmem [thread:$0]  %s1, 5120, %s27, [#allocation7], 64, 64, 4
    $region9: #{net_forward.1} parent=1 // pred_fallthru
      _
    // Predicated region
    $region10: #{net_forward.1} parent=1 // pred_check
      _
    $region11: #{net_forward.1} parent=1 // pred_check_branch
      %34 = sbr.rel (0) target = $region13
    $region12: #{net_forward.1} parent=1 // pred_region
      %s36 = ssub.s32 512, 512
      %37 = vsyncadd [#allocation7], %s36
      %s38 = sshll.u32 [#allocation8], 4
      %s39 = int_to_ptr.vmem [resolvable:$true] %s38
      %44 = dma.hbm_to_vmem [thread:$0]  %s2, 512, %s39, [#allocation7], 128, 128, 8
    $region13: #{net_forward.1} parent=1 // pred_fallthru
      _
    // Predicated region
    $region14: #{net_forward.1} parent=1 // pred_check
      _
    $region15: #{net_forward.1} parent=1 // pred_check_branch
      %46 = sbr.rel (0) target = $region17
    $region16: #{net_forward.1} parent=1 // pred_region
      %47 = dma.done [#allocation4], 16
    $region17: #{net_forward.1} parent=1 // pred_fallthru
      _
    // Predicated region
    $region18: #{net_forward.1} parent=1 // pred_check
      _
    $region19: #{net_forward.1} parent=1 // pred_check_branch
      %49 = sbr.rel (0) target = $region21
    $region20: #{net_forward.1} parent=1 // pred_region
      %50 = dma.done [#allocation7], 5120
    $region21: #{net_forward.1} parent=1 // pred_fallthru
      _
    // Predicated region
    $region22: #{net_forward.1} parent=1 // pred_check
      _
    $region23: #{net_forward.1} parent=1 // pred_check_branch
      %52 = sbr.rel (0) target = $region25
    $region24: #{net_forward.1} parent=1 // pred_region
      %53 = dma.done [#allocation7], 512
    $region25: #{net_forward.1} parent=1 // pred_fallthru
      _
    %vm55 = vcmask 253952
    %56 = vst.msk [vmem:[#allocation2] sm:$0x1] %vm55, 0.0
    %v57 = vld [vmem:[#allocation3] sm:$0x1]
    %vm58 = vcmask 131072
    %59 = vst.msk [vmem:[#allocation2] sm:$0x1] %vm58, %v57
    %v60 = vld [vmem:[#allocation2] sm:$0x1]
    %v61 = vld [vmem:[#allocation8 + $0x1e] sm:$0x1]
    %v62 = vld [vmem:[#allocation8 + $0x1f] sm:$0x1]
    %v63 = vld [vmem:[#allocation6] sm:$0xf]
    %v64 = vld [vmem:[#allocation6 + $0x4] sm:$0xf]
    %v65 = vld [vmem:[#allocation6 + $0x8] sm:$0xf]
    %v66 = vld [vmem:[#allocation6 + $0xc] sm:$0xf]
    %v67 = vld [vmem:[#allocation8] sm:$0x1]
    %v68 = vpack.c.bf16 %v60, %v60
    %v73 = vunpack.c.l.b16 %v63
    %v74 = vunpack.c.l.b16 %v64
    %v75 = vunpack.c.l.b16 %v65
    %v76 = vunpack.c.l.b16 %v66
    %v77 = vpack.c.b16 %v74, %v73
    %v78 = vpack.c.b16 %v76, %v75
    %vm81 = vcmask 261120
    %v83 = vsel %vm81, %v68, 0
    %85 = vmatprep.subr.bf16.mxu0 0
    %86 = vmatpush1.bf16.msra.mxu0 0
    %87 = vmatprep.subr.bf16.mxu0 0
    %88 = vmatpush1.bf16.msra.mxu0 0
    %89 = vmatprep.subr.bf16.mxu0 0
    %90 = vmatpush1.bf16.msra.mxu0 0
    %91 = vmatprep.subr.bf16.mxu0 0
    %92 = vmatpush1.bf16.msra.mxu0 0
    %93 = vmatprep.subr.bf16.mxu0 0
    %94 = vmatpush1.bf16.msra.mxu0 0
    %95 = vmatprep.subr.bf16.mxu0 0
    %96 = vmatpush1.bf16.msra.mxu0 0
    %97 = vmatprep.subr.bf16.mxu0 0
    %98 = vmatpush1.bf16.msra.mxu0 %v78
    %99 = vmatprep.subr.bf16.mxu0 0
    %100 = vmatpush1.bf16.msra.mxu0 %v77
    %101 = vmatprep.subr.bf16.mxu0 0
    %102 = vmatpush2.bf16.msra.mxu0 0
    %103 = vmatprep.subr.bf16.mxu0 0
    %104 = vmatpush2.bf16.msra.mxu0 0
    %105 = vmatprep.subr.bf16.mxu0 0
    %106 = vmatpush2.bf16.msra.mxu0 0
    %107 = vmatprep.subr.bf16.mxu0 0
    %108 = vmatpush2.bf16.msra.mxu0 0
    %109 = vmatprep.subr.bf16.mxu0 0
    %110 = vmatpush2.bf16.msra.mxu0 0
    %111 = vmatprep.subr.bf16.mxu0 0
    %112 = vmatpush2.bf16.msra.mxu0 0
    %113 = vmatprep.subr.bf16.mxu0 0
    %114 = vmatpush2.bf16.msra.mxu0 0
    %115 = vmatprep.subr.bf16.mxu0 0
    %116 = vmatpush2.bf16.msra.mxu0 0
    %117 = vmatprep.mubr.bf16.mxu0 0
    %118 = vmatmul.mubr.bf16.gmra.mxu0 %v83
    %v119 = vpop.f32.mrf.mxu0
    %v120 = vadd.f32 %v67, %v119
    %v121 = vpop.f32.mrf.mxu0
    %v122 = vpop.f32.mrf.mxu0
    %v123 = vpop.f32.mrf.mxu0
    %124 = vdwg.mxu0
    %v125 = vtanh.pop %v120
    %v126 = vmul.f32 %v61, %v125
    %v127 = vadd.f32 %v126, %v62
    %v128 = vld [vmem:[#allocation8 + $0xa] sm:$0x1]
    %130 = vrot.lane.b32.xlu0 %v128, 32
    %v131 = vpop.permute.xlu0 %130
    %v133 = vmul.f32 %v127, %v131
    %135 = vrot.lane.b32.xlu0 %v127, 64
    %v136 = vpop.permute.xlu0 %135
    %v138 = vmul.f32 %v127, %v136
    %140 = vrot.lane.b32.xlu0 %v138, 32
    %v141 = vpop.permute.xlu0 %140
    %v143 = vadd.f32 %v133, %v141
    %v144 = vld [vmem:[#allocation6 + $0x10] sm:$0xf]
    %v145 = vld [vmem:[#allocation6 + $0x14] sm:$0xf]
    %v146 = vld [vmem:[#allocation6 + $0x18] sm:$0xf]
    %v147 = vld [vmem:[#allocation6 + $0x1c] sm:$0xf]
    %v148 = vld [vmem:[#allocation8 + $0x1] sm:$0x1]
    %v149 = vpack.c.bf16 %v143, %v143
    %151 = vrot.lane.b32.xlu0 %v149, 96
    %v152 = vpop.permute.xlu0 %151
    %v157 = vunpack.c.l.b16 %v144
    %v158 = vunpack.c.l.b16 %v145
    %v159 = vunpack.c.l.b16 %v146
    %v160 = vunpack.c.l.b16 %v147
    %v161 = vpack.c.b16 %v158, %v157
    %v162 = vpack.c.b16 %v160, %v159
    %v166 = vsel %vm81, %v152, 0
    %168 = vmatprep.subr.bf16.mxu0 0
    %169 = vmatpush1.bf16.msra.mxu0 0
    %170 = vmatprep.subr.bf16.mxu0 0
    %171 = vmatpush1.bf16.msra.mxu0 0
    %172 = vmatprep.subr.bf16.mxu0 0
    %173 = vmatpush1.bf16.msra.mxu0 0
    %174 = vmatprep.subr.bf16.mxu0 0
    %175 = vmatpush1.bf16.msra.mxu0 0
    %176 = vmatprep.subr.bf16.mxu0 0
    %177 = vmatpush1.bf16.msra.mxu0 0
    %178 = vmatprep.subr.bf16.mxu0 0
    %179 = vmatpush1.bf16.msra.mxu0 0
    %180 = vmatprep.subr.bf16.mxu0 0
    %181 = vmatpush1.bf16.msra.mxu0 %v162
    %182 = vmatprep.subr.bf16.mxu0 0
    %183 = vmatpush1.bf16.msra.mxu0 %v161
    %184 = vmatprep.subr.bf16.mxu0 0
    %185 = vmatpush2.bf16.msra.mxu0 0
    %186 = vmatprep.subr.bf16.mxu0 0
    %187 = vmatpush2.bf16.msra.mxu0 0
    %188 = vmatprep.subr.bf16.mxu0 0
    %189 = vmatpush2.bf16.msra.mxu0 0
    %190 = vmatprep.subr.bf16.mxu0 0
    %191 = vmatpush2.bf16.msra.mxu0 0
    %192 = vmatprep.subr.bf16.mxu0 0
    %193 = vmatpush2.bf16.msra.mxu0 0
    %194 = vmatprep.subr.bf16.mxu0 0
    %195 = vmatpush2.bf16.msra.mxu0 0
    %196 = vmatprep.subr.bf16.mxu0 0
    %197 = vmatpush2.bf16.msra.mxu0 0
    %198 = vmatprep.subr.bf16.mxu0 0
    %199 = vmatpush2.bf16.msra.mxu0 0
    %200 = vmatprep.mubr.bf16.mxu0 0
    %201 = vmatmul.mubr.bf16.gmra.mxu0 %v166
    %v202 = vpop.f32.mrf.mxu0
    %v203 = vadd.f32 %v148, %v202
    %v204 = vpop.f32.mrf.mxu0
    %v205 = vpop.f32.mrf.mxu0
    %v206 = vpop.f32.mrf.mxu0
    %207 = vdwg.mxu0
    %v208 = vtanh.pop %v203
    %v209 = vmul.f32 %v61, %v208
    %v210 = vadd.f32 %v209, %v62
    %v211 = vld [vmem:[#allocation8 + $0xb] sm:$0x1]
    %213 = vrot.lane.b32.xlu0 %v211, 32
    %v214 = vpop.permute.xlu0 %213
    %v216 = vmul.f32 %v210, %v214
    %218 = vrot.lane.b32.xlu0 %v210, 64
    %v219 = vpop.permute.xlu0 %218
    %v221 = vmul.f32 %v210, %v219
    %223 = vrot.lane.b32.xlu0 %v221, 32
    %v224 = vpop.permute.xlu0 %223
    %v226 = vadd.f32 %v216, %v224
    %v227 = vld [vmem:[#allocation6 + $0x20] sm:$0xf]
    %v228 = vld [vmem:[#allocation6 + $0x24] sm:$0xf]
    %v229 = vld [vmem:[#allocation6 + $0x28] sm:$0xf]
    %v230 = vld [vmem:[#allocation6 + $0x2c] sm:$0xf]
    %v231 = vld [vmem:[#allocation8 + $0x2] sm:$0x1]
    %v232 = vpack.c.bf16 %v226, %v226
    %234 = vrot.lane.b32.xlu0 %v232, 96
    %v235 = vpop.permute.xlu0 %234
    %v240 = vunpack.c.l.b16 %v227
    %v241 = vunpack.c.l.b16 %v228
    %v242 = vunpack.c.l.b16 %v229
    %v243 = vunpack.c.l.b16 %v230
    %v244 = vpack.c.b16 %v241, %v240
    %v245 = vpack.c.b16 %v243, %v242
    %v249 = vsel %vm81, %v235, 0
    %251 = vmatprep.subr.bf16.mxu0 0
    %252 = vmatpush1.bf16.msra.mxu0 0
    %253 = vmatprep.subr.bf16.mxu0 0
    %254 = vmatpush1.bf16.msra.mxu0 0
    %255 = vmatprep.subr.bf16.mxu0 0
    %256 = vmatpush1.bf16.msra.mxu0 0
    %257 = vmatprep.subr.bf16.mxu0 0
    %258 = vmatpush1.bf16.msra.mxu0 0
    %259 = vmatprep.subr.bf16.mxu0 0
    %260 = vmatpush1.bf16.msra.mxu0 0
    %261 = vmatprep.subr.bf16.mxu0 0
    %262 = vmatpush1.bf16.msra.mxu0 0
    %263 = vmatprep.subr.bf16.mxu0 0
    %264 = vmatpush1.bf16.msra.mxu0 %v245
    %265 = vmatprep.subr.bf16.mxu0 0
    %266 = vmatpush1.bf16.msra.mxu0 %v244
    %267 = vmatprep.subr.bf16.mxu0 0
    %268 = vmatpush2.bf16.msra.mxu0 0
    %269 = vmatprep.subr.bf16.mxu0 0
    %270 = vmatpush2.bf16.msra.mxu0 0
    %271 = vmatprep.subr.bf16.mxu0 0
    %272 = vmatpush2.bf16.msra.mxu0 0
    %273 = vmatprep.subr.bf16.mxu0 0
    %274 = vmatpush2.bf16.msra.mxu0 0
    %275 = vmatprep.subr.bf16.mxu0 0
    %276 = vmatpush2.bf16.msra.mxu0 0
    %277 = vmatprep.subr.bf16.mxu0 0
    %278 = vmatpush2.bf16.msra.mxu0 0
    %279 = vmatprep.subr.bf16.mxu0 0
    %280 = vmatpush2.bf16.msra.mxu0 0
    %281 = vmatprep.subr.bf16.mxu0 0
    %282 = vmatpush2.bf16.msra.mxu0 0
    %283 = vmatprep.mubr.bf16.mxu0 0
    %284 = vmatmul.mubr.bf16.gmra.mxu0 %v249
    %v285 = vpop.f32.mrf.mxu0
    %v286 = vadd.f32 %v231, %v285
    %v287 = vpop.f32.mrf.mxu0
    %v288 = vpop.f32.mrf.mxu0
    %v289 = vpop.f32.mrf.mxu0
    %290 = vdwg.mxu0
    %v291 = vtanh.pop %v286
    %v292 = vmul.f32 %v61, %v291
    %v293 = vadd.f32 %v292, %v62
    %v294 = vld [vmem:[#allocation8 + $0xc] sm:$0x1]
    %296 = vrot.lane.b32.xlu0 %v294, 32
    %v297 = vpop.permute.xlu0 %296
    %v299 = vmul.f32 %v293, %v297
    %301 = vrot.lane.b32.xlu0 %v293, 64
    %v302 = vpop.permute.xlu0 %301
    %v304 = vmul.f32 %v293, %v302
    %306 = vrot.lane.b32.xlu0 %v304, 32
    %v307 = vpop.permute.xlu0 %306
    %v309 = vadd.f32 %v299, %v307
    %v310 = vld [vmem:[#allocation6 + $0x30] sm:$0xf]
    %v311 = vld [vmem:[#allocation6 + $0x34] sm:$0xf]
    %v312 = vld [vmem:[#allocation6 + $0x38] sm:$0xf]
    %v313 = vld [vmem:[#allocation6 + $0x3c] sm:$0xf]
    %v314 = vld [vmem:[#allocation8 + $0x3] sm:$0x1]
    %v315 = vpack.c.bf16 %v309, %v309
    %317 = vrot.lane.b32.xlu0 %v315, 96
    %v318 = vpop.permute.xlu0 %317
    %v323 = vunpack.c.l.b16 %v310
    %v324 = vunpack.c.l.b16 %v311
    %v325 = vunpack.c.l.b16 %v312
    %v326 = vunpack.c.l.b16 %v313
    %v327 = vpack.c.b16 %v324, %v323
    %v328 = vpack.c.b16 %v326, %v325
    %v332 = vsel %vm81, %v318, 0
    %334 = vmatprep.subr.bf16.mxu0 0
    %335 = vmatpush1.bf16.msra.mxu0 0
    %336 = vmatprep.subr.bf16.mxu0 0
    %337 = vmatpush1.bf16.msra.mxu0 0
    %338 = vmatprep.subr.bf16.mxu0 0
    %339 = vmatpush1.bf16.msra.mxu0 0
    %340 = vmatprep.subr.bf16.mxu0 0
    %341 = vmatpush1.bf16.msra.mxu0 0
    %342 = vmatprep.subr.bf16.mxu0 0
    %343 = vmatpush1.bf16.msra.mxu0 0
    %344 = vmatprep.subr.bf16.mxu0 0
    %345 = vmatpush1.bf16.msra.mxu0 0
    %346 = vmatprep.subr.bf16.mxu0 0
    %347 = vmatpush1.bf16.msra.mxu0 %v328
    %348 = vmatprep.subr.bf16.mxu0 0
    %349 = vmatpush1.bf16.msra.mxu0 %v327
    %350 = vmatprep.subr.bf16.mxu0 0
    %351 = vmatpush2.bf16.msra.mxu0 0
    %352 = vmatprep.subr.bf16.mxu0 0
    %353 = vmatpush2.bf16.msra.mxu0 0
    %354 = vmatprep.subr.bf16.mxu0 0
    %355 = vmatpush2.bf16.msra.mxu0 0
    %356 = vmatprep.subr.bf16.mxu0 0
    %357 = vmatpush2.bf16.msra.mxu0 0
    %358 = vmatprep.subr.bf16.mxu0 0
    %359 = vmatpush2.bf16.msra.mxu0 0
    %360 = vmatprep.subr.bf16.mxu0 0
    %361 = vmatpush2.bf16.msra.mxu0 0
    %362 = vmatprep.subr.bf16.mxu0 0
    %363 = vmatpush2.bf16.msra.mxu0 0
    %364 = vmatprep.subr.bf16.mxu0 0
    %365 = vmatpush2.bf16.msra.mxu0 0
    %366 = vmatprep.mubr.bf16.mxu0 0
    %367 = vmatmul.mubr.bf16.gmra.mxu0 %v332
    %v368 = vpop.f32.mrf.mxu0
    %v369 = vadd.f32 %v314, %v368
    %v370 = vpop.f32.mrf.mxu0
    %v371 = vpop.f32.mrf.mxu0
    %v372 = vpop.f32.mrf.mxu0
    %373 = vdwg.mxu0
    %v374 = vtanh.pop %v369
    %v375 = vmul.f32 %v61, %v374
    %v376 = vadd.f32 %v375, %v62
    %v377 = vld [vmem:[#allocation8 + $0xd] sm:$0x1]
    %379 = vrot.lane.b32.xlu0 %v377, 32
    %v380 = vpop.permute.xlu0 %379
    %v382 = vmul.f32 %v376, %v380
    %384 = vrot.lane.b32.xlu0 %v376, 64
    %v385 = vpop.permute.xlu0 %384
    %v387 = vmul.f32 %v376, %v385
    %389 = vrot.lane.b32.xlu0 %v387, 32
    %v390 = vpop.permute.xlu0 %389
    %v392 = vadd.f32 %v382, %v390
    %v393 = vld [vmem:[#allocation6 + $0x40] sm:$0xf]
    %v394 = vld [vmem:[#allocation6 + $0x44] sm:$0xf]
    %v395 = vld [vmem:[#allocation6 + $0x48] sm:$0xf]
    %v396 = vld [vmem:[#allocation6 + $0x4c] sm:$0xf]
    %v397 = vld [vmem:[#allocation8 + $0x4] sm:$0x1]
    %v398 = vpack.c.bf16 %v392, %v392
    %400 = vrot.lane.b32.xlu0 %v398, 96
    %v401 = vpop.permute.xlu0 %400
    %v406 = vunpack.c.l.b16 %v393
    %v407 = vunpack.c.l.b16 %v394
    %v408 = vunpack.c.l.b16 %v395
    %v409 = vunpack.c.l.b16 %v396
    %v410 = vpack.c.b16 %v407, %v406
    %v411 = vpack.c.b16 %v409, %v408
    %v415 = vsel %vm81, %v401, 0
    %417 = vmatprep.subr.bf16.mxu0 0
    %418 = vmatpush1.bf16.msra.mxu0 0
    %419 = vmatprep.subr.bf16.mxu0 0
    %420 = vmatpush1.bf16.msra.mxu0 0
    %421 = vmatprep.subr.bf16.mxu0 0
    %422 = vmatpush1.bf16.msra.mxu0 0
    %423 = vmatprep.subr.bf16.mxu0 0
    %424 = vmatpush1.bf16.msra.mxu0 0
    %425 = vmatprep.subr.bf16.mxu0 0
    %426 = vmatpush1.bf16.msra.mxu0 0
    %427 = vmatprep.subr.bf16.mxu0 0
    %428 = vmatpush1.bf16.msra.mxu0 0
    %429 = vmatprep.subr.bf16.mxu0 0
    %430 = vmatpush1.bf16.msra.mxu0 %v411
    %431 = vmatprep.subr.bf16.mxu0 0
    %432 = vmatpush1.bf16.msra.mxu0 %v410
    %433 = vmatprep.subr.bf16.mxu0 0
    %434 = vmatpush2.bf16.msra.mxu0 0
    %435 = vmatprep.subr.bf16.mxu0 0
    %436 = vmatpush2.bf16.msra.mxu0 0
    %437 = vmatprep.subr.bf16.mxu0 0
    %438 = vmatpush2.bf16.msra.mxu0 0
    %439 = vmatprep.subr.bf16.mxu0 0
    %440 = vmatpush2.bf16.msra.mxu0 0
    %441 = vmatprep.subr.bf16.mxu0 0
    %442 = vmatpush2.bf16.msra.mxu0 0
    %443 = vmatprep.subr.bf16.mxu0 0
    %444 = vmatpush2.bf16.msra.mxu0 0
    %445 = vmatprep.subr.bf16.mxu0 0
    %446 = vmatpush2.bf16.msra.mxu0 0
    %447 = vmatprep.subr.bf16.mxu0 0
    %448 = vmatpush2.bf16.msra.mxu0 0
    %449 = vmatprep.mubr.bf16.mxu0 0
    %450 = vmatmul.mubr.bf16.gmra.mxu0 %v415
    %v451 = vpop.f32.mrf.mxu0
    %v452 = vadd.f32 %v397, %v451
    %v453 = vpop.f32.mrf.mxu0
    %v454 = vpop.f32.mrf.mxu0
    %v455 = vpop.f32.mrf.mxu0
    %456 = vdwg.mxu0
    %v457 = vtanh.pop %v452
    %v458 = vmul.f32 %v61, %v457
    %v459 = vadd.f32 %v458, %v62
    %v460 = vld [vmem:[#allocation8 + $0xe] sm:$0x1]
    %462 = vrot.lane.b32.xlu0 %v460, 32
    %v463 = vpop.permute.xlu0 %462
    %v465 = vmul.f32 %v459, %v463
    %467 = vrot.lane.b32.xlu0 %v459, 64
    %v468 = vpop.permute.xlu0 %467
    %v470 = vmul.f32 %v459, %v468
    %472 = vrot.lane.b32.xlu0 %v470, 32
    %v473 = vpop.permute.xlu0 %472
    %v475 = vadd.f32 %v465, %v473
    %v476 = vld [vmem:[#allocation6 + $0x50] sm:$0xf]
    %v477 = vld [vmem:[#allocation6 + $0x54] sm:$0xf]
    %v478 = vld [vmem:[#allocation6 + $0x58] sm:$0xf]
    %v479 = vld [vmem:[#allocation6 + $0x5c] sm:$0xf]
    %v480 = vld [vmem:[#allocation8 + $0x5] sm:$0x1]
    %v481 = vpack.c.bf16 %v475, %v475
    %483 = vrot.lane.b32.xlu0 %v481, 96
    %v484 = vpop.permute.xlu0 %483
    %v489 = vunpack.c.l.b16 %v476
    %v490 = vunpack.c.l.b16 %v477
    %v491 = vunpack.c.l.b16 %v478
    %v492 = vunpack.c.l.b16 %v479
    %v493 = vpack.c.b16 %v490, %v489
    %v494 = vpack.c.b16 %v492, %v491
    %v498 = vsel %vm81, %v484, 0
    %500 = vmatprep.subr.bf16.mxu0 0
    %501 = vmatpush1.bf16.msra.mxu0 0
    %502 = vmatprep.subr.bf16.mxu0 0
    %503 = vmatpush1.bf16.msra.mxu0 0
    %504 = vmatprep.subr.bf16.mxu0 0
    %505 = vmatpush1.bf16.msra.mxu0 0
    %506 = vmatprep.subr.bf16.mxu0 0
    %507 = vmatpush1.bf16.msra.mxu0 0
    %508 = vmatprep.subr.bf16.mxu0 0
    %509 = vmatpush1.bf16.msra.mxu0 0
    %510 = vmatprep.subr.bf16.mxu0 0
    %511 = vmatpush1.bf16.msra.mxu0 0
    %512 = vmatprep.subr.bf16.mxu0 0
    %513 = vmatpush1.bf16.msra.mxu0 %v494
    %514 = vmatprep.subr.bf16.mxu0 0
    %515 = vmatpush1.bf16.msra.mxu0 %v493
    %516 = vmatprep.subr.bf16.mxu0 0
    %517 = vmatpush2.bf16.msra.mxu0 0
    %518 = vmatprep.subr.bf16.mxu0 0
    %519 = vmatpush2.bf16.msra.mxu0 0
    %520 = vmatprep.subr.bf16.mxu0 0
    %521 = vmatpush2.bf16.msra.mxu0 0
    %522 = vmatprep.subr.bf16.mxu0 0
    %523 = vmatpush2.bf16.msra.mxu0 0
    %524 = vmatprep.subr.bf16.mxu0 0
    %525 = vmatpush2.bf16.msra.mxu0 0
    %526 = vmatprep.subr.bf16.mxu0 0
    %527 = vmatpush2.bf16.msra.mxu0 0
    %528 = vmatprep.subr.bf16.mxu0 0
    %529 = vmatpush2.bf16.msra.mxu0 0
    %530 = vmatprep.subr.bf16.mxu0 0
    %531 = vmatpush2.bf16.msra.mxu0 0
    %532 = vmatprep.mubr.bf16.mxu0 0
    %533 = vmatmul.mubr.bf16.gmra.mxu0 %v498
    %v534 = vpop.f32.mrf.mxu0
    %v535 = vadd.f32 %v480, %v534
    %v536 = vpop.f32.mrf.mxu0
    %v537 = vpop.f32.mrf.mxu0
    %v538 = vpop.f32.mrf.mxu0
    %539 = vdwg.mxu0
    %v540 = vtanh.pop %v535
    %v541 = vmul.f32 %v61, %v540
    %v542 = vadd.f32 %v541, %v62
    %v543 = vld [vmem:[#allocation8 + $0xf] sm:$0x1]
    %545 = vrot.lane.b32.xlu0 %v543, 32
    %v546 = vpop.permute.xlu0 %545
    %v548 = vmul.f32 %v542, %v546
    %550 = vrot.lane.b32.xlu0 %v542, 64
    %v551 = vpop.permute.xlu0 %550
    %v553 = vmul.f32 %v542, %v551
    %555 = vrot.lane.b32.xlu0 %v553, 32
    %v556 = vpop.permute.xlu0 %555
    %v558 = vadd.f32 %v548, %v556
    %v559 = vld [vmem:[#allocation6 + $0x60] sm:$0xf]
    %v560 = vld [vmem:[#allocation6 + $0x64] sm:$0xf]
    %v561 = vld [vmem:[#allocation6 + $0x68] sm:$0xf]
    %v562 = vld [vmem:[#allocation6 + $0x6c] sm:$0xf]
    %v563 = vld [vmem:[#allocation8 + $0x6] sm:$0x1]
    %v564 = vpack.c.bf16 %v558, %v558
    %566 = vrot.lane.b32.xlu0 %v564, 96
    %v567 = vpop.permute.xlu0 %566
    %v572 = vunpack.c.l.b16 %v559
    %v573 = vunpack.c.l.b16 %v560
    %v574 = vunpack.c.l.b16 %v561
    %v575 = vunpack.c.l.b16 %v562
    %v576 = vpack.c.b16 %v573, %v572
    %v577 = vpack.c.b16 %v575, %v574
    %v581 = vsel %vm81, %v567, 0
    %583 = vmatprep.subr.bf16.mxu0 0
    %584 = vmatpush1.bf16.msra.mxu0 0
    %585 = vmatprep.subr.bf16.mxu0 0
    %586 = vmatpush1.bf16.msra.mxu0 0
    %587 = vmatprep.subr.bf16.mxu0 0
    %588 = vmatpush1.bf16.msra.mxu0 0
    %589 = vmatprep.subr.bf16.mxu0 0
    %590 = vmatpush1.bf16.msra.mxu0 0
    %591 = vmatprep.subr.bf16.mxu0 0
    %592 = vmatpush1.bf16.msra.mxu0 0
    %593 = vmatprep.subr.bf16.mxu0 0
    %594 = vmatpush1.bf16.msra.mxu0 0
    %595 = vmatprep.subr.bf16.mxu0 0
    %596 = vmatpush1.bf16.msra.mxu0 %v577
    %597 = vmatprep.subr.bf16.mxu0 0
    %598 = vmatpush1.bf16.msra.mxu0 %v576
    %599 = vmatprep.subr.bf16.mxu0 0
    %600 = vmatpush2.bf16.msra.mxu0 0
    %601 = vmatprep.subr.bf16.mxu0 0
    %602 = vmatpush2.bf16.msra.mxu0 0
    %603 = vmatprep.subr.bf16.mxu0 0
    %604 = vmatpush2.bf16.msra.mxu0 0
    %605 = vmatprep.subr.bf16.mxu0 0
    %606 = vmatpush2.bf16.msra.mxu0 0
    %607 = vmatprep.subr.bf16.mxu0 0
    %608 = vmatpush2.bf16.msra.mxu0 0
    %609 = vmatprep.subr.bf16.mxu0 0
    %610 = vmatpush2.bf16.msra.mxu0 0
    %611 = vmatprep.subr.bf16.mxu0 0
    %612 = vmatpush2.bf16.msra.mxu0 0
    %613 = vmatprep.subr.bf16.mxu0 0
    %614 = vmatpush2.bf16.msra.mxu0 0
    %615 = vmatprep.mubr.bf16.mxu0 0
    %616 = vmatmul.mubr.bf16.gmra.mxu0 %v581
    %v617 = vpop.f32.mrf.mxu0
    %v618 = vadd.f32 %v563, %v617
    %v619 = vpop.f32.mrf.mxu0
    %v620 = vpop.f32.mrf.mxu0
    %v621 = vpop.f32.mrf.mxu0
    %622 = vdwg.mxu0
    %v623 = vtanh.pop %v618
    %v624 = vmul.f32 %v61, %v623
    %v625 = vadd.f32 %v624, %v62
    %v626 = vld [vmem:[#allocation8 + $0x10] sm:$0x1]
    %628 = vrot.lane.b32.xlu0 %v626, 32
    %v629 = vpop.permute.xlu0 %628
    %v631 = vmul.f32 %v625, %v629
    %633 = vrot.lane.b32.xlu0 %v625, 64
    %v634 = vpop.permute.xlu0 %633
    %v636 = vmul.f32 %v625, %v634
    %638 = vrot.lane.b32.xlu0 %v636, 32
    %v639 = vpop.permute.xlu0 %638
    %v641 = vadd.f32 %v631, %v639
    %v642 = vld [vmem:[#allocation6 + $0x70] sm:$0xf]
    %v643 = vld [vmem:[#allocation6 + $0x74] sm:$0xf]
    %v644 = vld [vmem:[#allocation6 + $0x78] sm:$0xf]
    %v645 = vld [vmem:[#allocation6 + $0x7c] sm:$0xf]
    %v646 = vld [vmem:[#allocation8 + $0x7] sm:$0x1]
    %v647 = vpack.c.bf16 %v641, %v641
    %649 = vrot.lane.b32.xlu0 %v647, 96
    %v650 = vpop.permute.xlu0 %649
    %v655 = vunpack.c.l.b16 %v642
    %v656 = vunpack.c.l.b16 %v643
    %v657 = vunpack.c.l.b16 %v644
    %v658 = vunpack.c.l.b16 %v645
    %v659 = vpack.c.b16 %v656, %v655
    %v660 = vpack.c.b16 %v658, %v657
    %v664 = vsel %vm81, %v650, 0
    %666 = vmatprep.subr.bf16.mxu0 0
    %667 = vmatpush1.bf16.msra.mxu0 0
    %668 = vmatprep.subr.bf16.mxu0 0
    %669 = vmatpush1.bf16.msra.mxu0 0
    %670 = vmatprep.subr.bf16.mxu0 0
    %671 = vmatpush1.bf16.msra.mxu0 0
    %672 = vmatprep.subr.bf16.mxu0 0
    %673 = vmatpush1.bf16.msra.mxu0 0
    %674 = vmatprep.subr.bf16.mxu0 0
    %675 = vmatpush1.bf16.msra.mxu0 0
    %676 = vmatprep.subr.bf16.mxu0 0
    %677 = vmatpush1.bf16.msra.mxu0 0
    %678 = vmatprep.subr.bf16.mxu0 0
    %679 = vmatpush1.bf16.msra.mxu0 %v660
    %680 = vmatprep.subr.bf16.mxu0 0
    %681 = vmatpush1.bf16.msra.mxu0 %v659
    %682 = vmatprep.subr.bf16.mxu0 0
    %683 = vmatpush2.bf16.msra.mxu0 0
    %684 = vmatprep.subr.bf16.mxu0 0
    %685 = vmatpush2.bf16.msra.mxu0 0
    %686 = vmatprep.subr.bf16.mxu0 0
    %687 = vmatpush2.bf16.msra.mxu0 0
    %688 = vmatprep.subr.bf16.mxu0 0
    %689 = vmatpush2.bf16.msra.mxu0 0
    %690 = vmatprep.subr.bf16.mxu0 0
    %691 = vmatpush2.bf16.msra.mxu0 0
    %692 = vmatprep.subr.bf16.mxu0 0
    %693 = vmatpush2.bf16.msra.mxu0 0
    %694 = vmatprep.subr.bf16.mxu0 0
    %695 = vmatpush2.bf16.msra.mxu0 0
    %696 = vmatprep.subr.bf16.mxu0 0
    %697 = vmatpush2.bf16.msra.mxu0 0
    %698 = vmatprep.mubr.bf16.mxu0 0
    %699 = vmatmul.mubr.bf16.gmra.mxu0 %v664
    %v700 = vpop.f32.mrf.mxu0
    %v701 = vadd.f32 %v646, %v700
    %v702 = vpop.f32.mrf.mxu0
    %v703 = vpop.f32.mrf.mxu0
    %v704 = vpop.f32.mrf.mxu0
    %705 = vdwg.mxu0
    %v706 = vtanh.pop %v701
    %v707 = vmul.f32 %v61, %v706
    %v708 = vadd.f32 %v707, %v62
    %v709 = vld [vmem:[#allocation8 + $0x11] sm:$0x1]
    %711 = vrot.lane.b32.xlu0 %v709, 32
    %v712 = vpop.permute.xlu0 %711
    %v714 = vmul.f32 %v708, %v712
    %716 = vrot.lane.b32.xlu0 %v708, 64
    %v717 = vpop.permute.xlu0 %716
    %v719 = vmul.f32 %v708, %v717
    %721 = vrot.lane.b32.xlu0 %v719, 32
    %v722 = vpop.permute.xlu0 %721
    %v724 = vadd.f32 %v714, %v722
    %v725 = vld [vmem:[#allocation6 + $0x80] sm:$0xf]
    %v726 = vld [vmem:[#allocation6 + $0x84] sm:$0xf]
    %v727 = vld [vmem:[#allocation6 + $0x88] sm:$0xf]
    %v728 = vld [vmem:[#allocation6 + $0x8c] sm:$0xf]
    %v729 = vld [vmem:[#allocation8 + $0x8] sm:$0x1]
    %v730 = vpack.c.bf16 %v724, %v724
    %732 = vrot.lane.b32.xlu0 %v730, 96
    %v733 = vpop.permute.xlu0 %732
    %v738 = vunpack.c.l.b16 %v725
    %v739 = vunpack.c.l.b16 %v726
    %v740 = vunpack.c.l.b16 %v727
    %v741 = vunpack.c.l.b16 %v728
    %v742 = vpack.c.b16 %v739, %v738
    %v743 = vpack.c.b16 %v741, %v740
    %v747 = vsel %vm81, %v733, 0
    %749 = vmatprep.subr.bf16.mxu0 0
    %750 = vmatpush1.bf16.msra.mxu0 0
    %751 = vmatprep.subr.bf16.mxu0 0
    %752 = vmatpush1.bf16.msra.mxu0 0
    %753 = vmatprep.subr.bf16.mxu0 0
    %754 = vmatpush1.bf16.msra.mxu0 0
    %755 = vmatprep.subr.bf16.mxu0 0
    %756 = vmatpush1.bf16.msra.mxu0 0
    %757 = vmatprep.subr.bf16.mxu0 0
    %758 = vmatpush1.bf16.msra.mxu0 0
    %759 = vmatprep.subr.bf16.mxu0 0
    %760 = vmatpush1.bf16.msra.mxu0 0
    %761 = vmatprep.subr.bf16.mxu0 0
    %762 = vmatpush1.bf16.msra.mxu0 %v743
    %763 = vmatprep.subr.bf16.mxu0 0
    %764 = vmatpush1.bf16.msra.mxu0 %v742
    %765 = vmatprep.subr.bf16.mxu0 0
    %766 = vmatpush2.bf16.msra.mxu0 0
    %767 = vmatprep.subr.bf16.mxu0 0
    %768 = vmatpush2.bf16.msra.mxu0 0
    %769 = vmatprep.subr.bf16.mxu0 0
    %770 = vmatpush2.bf16.msra.mxu0 0
    %771 = vmatprep.subr.bf16.mxu0 0
    %772 = vmatpush2.bf16.msra.mxu0 0
    %773 = vmatprep.subr.bf16.mxu0 0
    %774 = vmatpush2.bf16.msra.mxu0 0
    %775 = vmatprep.subr.bf16.mxu0 0
    %776 = vmatpush2.bf16.msra.mxu0 0
    %777 = vmatprep.subr.bf16.mxu0 0
    %778 = vmatpush2.bf16.msra.mxu0 0
    %779 = vmatprep.subr.bf16.mxu0 0
    %780 = vmatpush2.bf16.msra.mxu0 0
    %781 = vmatprep.mubr.bf16.mxu0 0
    %782 = vmatmul.mubr.bf16.gmra.mxu0 %v747
    %v783 = vpop.f32.mrf.mxu0
    %v784 = vadd.f32 %v729, %v783
    %v785 = vpop.f32.mrf.mxu0
    %v786 = vpop.f32.mrf.mxu0
    %v787 = vpop.f32.mrf.mxu0
    %788 = vdwg.mxu0
    %v789 = vtanh.pop %v784
    %v790 = vmul.f32 %v61, %v789
    %v791 = vadd.f32 %v790, %v62
    %v792 = vld [vmem:[#allocation8 + $0x12] sm:$0x1]
    %794 = vrot.lane.b32.xlu0 %v792, 32
    %v795 = vpop.permute.xlu0 %794
    %v797 = vmul.f32 %v791, %v795
    %799 = vrot.lane.b32.xlu0 %v791, 64
    %v800 = vpop.permute.xlu0 %799
    %v802 = vmul.f32 %v791, %v800
    %804 = vrot.lane.b32.xlu0 %v802, 32
    %v805 = vpop.permute.xlu0 %804
    %v807 = vadd.f32 %v797, %v805
    %v808 = vld [vmem:[#allocation6 + $0x90] sm:$0xf]
    %v809 = vld [vmem:[#allocation6 + $0x94] sm:$0xf]
    %v810 = vld [vmem:[#allocation6 + $0x98] sm:$0xf]
    %v811 = vld [vmem:[#allocation6 + $0x9c] sm:$0xf]
    %v812 = vld [vmem:[#allocation8 + $0x9] sm:$0x1]
    %v813 = vpack.c.bf16 %v807, %v807
    %815 = vrot.lane.b32.xlu0 %v813, 96
    %v816 = vpop.permute.xlu0 %815
    %v821 = vunpack.c.l.b16 %v808
    %v822 = vunpack.c.l.b16 %v809
    %v823 = vunpack.c.l.b16 %v810
    %v824 = vunpack.c.l.b16 %v811
    %v825 = vpack.c.b16 %v822, %v821
    %v826 = vpack.c.b16 %v824, %v823
    %v830 = vsel %vm81, %v816, 0
    %832 = vmatprep.subr.bf16.mxu0 0
    %833 = vmatpush1.bf16.msra.mxu0 0
    %834 = vmatprep.subr.bf16.mxu0 0
    %835 = vmatpush1.bf16.msra.mxu0 0
    %836 = vmatprep.subr.bf16.mxu0 0
    %837 = vmatpush1.bf16.msra.mxu0 0
    %838 = vmatprep.subr.bf16.mxu0 0
    %839 = vmatpush1.bf16.msra.mxu0 0
    %840 = vmatprep.subr.bf16.mxu0 0
    %841 = vmatpush1.bf16.msra.mxu0 0
    %842 = vmatprep.subr.bf16.mxu0 0
    %843 = vmatpush1.bf16.msra.mxu0 0
    %844 = vmatprep.subr.bf16.mxu0 0
    %845 = vmatpush1.bf16.msra.mxu0 %v826
    %846 = vmatprep.subr.bf16.mxu0 0
    %847 = vmatpush1.bf16.msra.mxu0 %v825
    %848 = vmatprep.subr.bf16.mxu0 0
    %849 = vmatpush2.bf16.msra.mxu0 0
    %850 = vmatprep.subr.bf16.mxu0 0
    %851 = vmatpush2.bf16.msra.mxu0 0
    %852 = vmatprep.subr.bf16.mxu0 0
    %853 = vmatpush2.bf16.msra.mxu0 0
    %854 = vmatprep.subr.bf16.mxu0 0
    %855 = vmatpush2.bf16.msra.mxu0 0
    %856 = vmatprep.subr.bf16.mxu0 0
    %857 = vmatpush2.bf16.msra.mxu0 0
    %858 = vmatprep.subr.bf16.mxu0 0
    %859 = vmatpush2.bf16.msra.mxu0 0
    %860 = vmatprep.subr.bf16.mxu0 0
    %861 = vmatpush2.bf16.msra.mxu0 0
    %862 = vmatprep.subr.bf16.mxu0 0
    %863 = vmatpush2.bf16.msra.mxu0 0
    %864 = vmatprep.mubr.bf16.mxu0 0
    %865 = vmatmul.mubr.bf16.gmra.mxu0 %v830
    %v866 = vpop.f32.mrf.mxu0
    %v867 = vadd.f32 %v812, %v866
    %v868 = vpop.f32.mrf.mxu0
    %v869 = vpop.f32.mrf.mxu0
    %v870 = vpop.f32.mrf.mxu0
    %871 = vdwg.mxu0
    %v872 = vtanh.pop %v867
    %v873 = vmul.f32 %v61, %v872
    %v874 = vadd.f32 %v873, %v62
    %v875 = vld [vmem:[#allocation8 + $0x13] sm:$0x1]
    %877 = vrot.lane.b32.xlu0 %v875, 32
    %v878 = vpop.permute.xlu0 %877
    %v880 = vmul.f32 %v874, %v878
    %882 = vrot.lane.b32.xlu0 %v874, 64
    %v883 = vpop.permute.xlu0 %882
    %v885 = vmul.f32 %v874, %v883
    %887 = vrot.lane.b32.xlu0 %v885, 32
    %v888 = vpop.permute.xlu0 %887
    %v890 = vadd.f32 %v880, %v888
    %v891 = vld [vmem:[#allocation6 + $0xa0] sm:$0xf]
    %v892 = vld [vmem:[#allocation6 + $0xa4] sm:$0xf]
    %v893 = vld [vmem:[#allocation6 + $0xa8] sm:$0xf]
    %v894 = vld [vmem:[#allocation6 + $0xac] sm:$0xf]
    %v895 = vld [vmem:[#allocation8 + $0x14] sm:$0x1]
    %v896 = vpack.c.bf16 %v890, %v890
    %898 = vrot.lane.b32.xlu0 %v896, 96
    %v899 = vpop.permute.xlu0 %898
    %v904 = vunpack.c.l.b16 %v891
    %v905 = vunpack.c.l.b16 %v892
    %v906 = vunpack.c.l.b16 %v893
    %v907 = vunpack.c.l.b16 %v894
    %v908 = vpack.c.b16 %v905, %v904
    %v909 = vpack.c.b16 %v907, %v906
    %v913 = vsel %vm81, %v899, 0
    %915 = vmatprep.subr.bf16.mxu0 0
    %916 = vmatpush1.bf16.msra.mxu0 0
    %917 = vmatprep.subr.bf16.mxu0 0
    %918 = vmatpush1.bf16.msra.mxu0 0
    %919 = vmatprep.subr.bf16.mxu0 0
    %920 = vmatpush1.bf16.msra.mxu0 0
    %921 = vmatprep.subr.bf16.mxu0 0
    %922 = vmatpush1.bf16.msra.mxu0 0
    %923 = vmatprep.subr.bf16.mxu0 0
    %924 = vmatpush1.bf16.msra.mxu0 0
    %925 = vmatprep.subr.bf16.mxu0 0
    %926 = vmatpush1.bf16.msra.mxu0 0
    %927 = vmatprep.subr.bf16.mxu0 0
    %928 = vmatpush1.bf16.msra.mxu0 %v909
    %929 = vmatprep.subr.bf16.mxu0 0
    %930 = vmatpush1.bf16.msra.mxu0 %v908
    %931 = vmatprep.subr.bf16.mxu0 0
    %932 = vmatpush2.bf16.msra.mxu0 0
    %933 = vmatprep.subr.bf16.mxu0 0
    %934 = vmatpush2.bf16.msra.mxu0 0
    %935 = vmatprep.subr.bf16.mxu0 0
    %936 = vmatpush2.bf16.msra.mxu0 0
    %937 = vmatprep.subr.bf16.mxu0 0
    %938 = vmatpush2.bf16.msra.mxu0 0
    %939 = vmatprep.subr.bf16.mxu0 0
    %940 = vmatpush2.bf16.msra.mxu0 0
    %941 = vmatprep.subr.bf16.mxu0 0
    %942 = vmatpush2.bf16.msra.mxu0 0
    %943 = vmatprep.subr.bf16.mxu0 0
    %944 = vmatpush2.bf16.msra.mxu0 0
    %945 = vmatprep.subr.bf16.mxu0 0
    %946 = vmatpush2.bf16.msra.mxu0 0
    %947 = vmatprep.mubr.bf16.mxu0 0
    %948 = vmatmul.mubr.bf16.gmra.mxu0 %v913
    %v949 = vpop.f32.mrf.mxu0
    %v950 = vadd.f32 0.0, %v949
    %v951 = vpop.f32.mrf.mxu0
    %v952 = vpop.f32.mrf.mxu0
    %v953 = vpop.f32.mrf.mxu0
    %954 = vdwg.mxu0
    %v955 = vadd.f32 %v950, %v895
    %v956 = vmul.f32 %v955, 0.01
    %v957 = vmax.f32 %v955, %v956
    %v958 = vld [vmem:[#allocation6 + $0xb0] sm:$0xf]
    %v959 = vld [vmem:[#allocation6 + $0xb4] sm:$0xf]
    %v960 = vld [vmem:[#allocation6 + $0xb8] sm:$0xf]
    %v961 = vld [vmem:[#allocation6 + $0xbc] sm:$0xf]
    %v962 = vld [vmem:[#allocation8 + $0x15] sm:$0x1]
    %v963 = vpack.c.bf16 %v957, %v957
    %v968 = vunpack.c.l.b16 %v958
    %v969 = vunpack.c.l.b16 %v959
    %v970 = vunpack.c.l.b16 %v960
    %v971 = vunpack.c.l.b16 %v961
    %v972 = vpack.c.b16 %v969, %v968
    %v973 = vpack.c.b16 %v971, %v970
    %v977 = vsel %vm81, %v963, 0
    %979 = vmatprep.subr.bf16.mxu0 0
    %980 = vmatpush1.bf16.msra.mxu0 0
    %981 = vmatprep.subr.bf16.mxu0 0
    %982 = vmatpush1.bf16.msra.mxu0 0
    %983 = vmatprep.subr.bf16.mxu0 0
    %984 = vmatpush1.bf16.msra.mxu0 0
    %985 = vmatprep.subr.bf16.mxu0 0
    %986 = vmatpush1.bf16.msra.mxu0 0
    %987 = vmatprep.subr.bf16.mxu0 0
    %988 = vmatpush1.bf16.msra.mxu0 0
    %989 = vmatprep.subr.bf16.mxu0 0
    %990 = vmatpush1.bf16.msra.mxu0 0
    %991 = vmatprep.subr.bf16.mxu0 0
    %992 = vmatpush1.bf16.msra.mxu0 %v973
    %993 = vmatprep.subr.bf16.mxu0 0
    %994 = vmatpush1.bf16.msra.mxu0 %v972
    %995 = vmatprep.subr.bf16.mxu0 0
    %996 = vmatpush2.bf16.msra.mxu0 0
    %997 = vmatprep.subr.bf16.mxu0 0
    %998 = vmatpush2.bf16.msra.mxu0 0
    %999 = vmatprep.subr.bf16.mxu0 0
    %1000 = vmatpush2.bf16.msra.mxu0 0
    %1001 = vmatprep.subr.bf16.mxu0 0
    %1002 = vmatpush2.bf16.msra.mxu0 0
    %1003 = vmatprep.subr.bf16.mxu0 0
    %1004 = vmatpush2.bf16.msra.mxu0 0
    %1005 = vmatprep.subr.bf16.mxu0 0
    %1006 = vmatpush2.bf16.msra.mxu0 0
    %1007 = vmatprep.subr.bf16.mxu0 0
    %1008 = vmatpush2.bf16.msra.mxu0 0
    %1009 = vmatprep.subr.bf16.mxu0 0
    %1010 = vmatpush2.bf16.msra.mxu0 0
    %1011 = vmatprep.mubr.bf16.mxu0 0
    %1012 = vmatmul.mubr.bf16.gmra.mxu0 %v977
    %v1013 = vpop.f32.mrf.mxu0
    %v1014 = vadd.f32 0.0, %v1013
    %v1015 = vpop.f32.mrf.mxu0
    %v1016 = vpop.f32.mrf.mxu0
    %v1017 = vpop.f32.mrf.mxu0
    %1018 = vdwg.mxu0
    %v1019 = vadd.f32 %v1014, %v962
    %v1020 = vmul.f32 %v1019, 0.01
    %v1021 = vmax.f32 %v1019, %v1020
    %v1022 = vld [vmem:[#allocation6 + $0xc0] sm:$0xf]
    %v1023 = vld [vmem:[#allocation6 + $0xc4] sm:$0xf]
    %v1024 = vld [vmem:[#allocation6 + $0xc8] sm:$0xf]
    %v1025 = vld [vmem:[#allocation6 + $0xcc] sm:$0xf]
    %v1026 = vld [vmem:[#allocation8 + $0x16] sm:$0x1]
    %v1027 = vpack.c.bf16 %v1021, %v1021
    %v1032 = vunpack.c.l.b16 %v1022
    %v1033 = vunpack.c.l.b16 %v1023
    %v1034 = vunpack.c.l.b16 %v1024
    %v1035 = vunpack.c.l.b16 %v1025
    %v1036 = vpack.c.b16 %v1033, %v1032
    %v1037 = vpack.c.b16 %v1035, %v1034
    %v1041 = vsel %vm81, %v1027, 0
    %1043 = vmatprep.subr.bf16.mxu0 0
    %1044 = vmatpush1.bf16.msra.mxu0 0
    %1045 = vmatprep.subr.bf16.mxu0 0
    %1046 = vmatpush1.bf16.msra.mxu0 0
    %1047 = vmatprep.subr.bf16.mxu0 0
    %1048 = vmatpush1.bf16.msra.mxu0 0
    %1049 = vmatprep.subr.bf16.mxu0 0
    %1050 = vmatpush1.bf16.msra.mxu0 0
    %1051 = vmatprep.subr.bf16.mxu0 0
    %1052 = vmatpush1.bf16.msra.mxu0 0
    %1053 = vmatprep.subr.bf16.mxu0 0
    %1054 = vmatpush1.bf16.msra.mxu0 0
    %1055 = vmatprep.subr.bf16.mxu0 0
    %1056 = vmatpush1.bf16.msra.mxu0 %v1037
    %1057 = vmatprep.subr.bf16.mxu0 0
    %1058 = vmatpush1.bf16.msra.mxu0 %v1036
    %1059 = vmatprep.subr.bf16.mxu0 0
    %1060 = vmatpush2.bf16.msra.mxu0 0
    %1061 = vmatprep.subr.bf16.mxu0 0
    %1062 = vmatpush2.bf16.msra.mxu0 0
    %1063 = vmatprep.subr.bf16.mxu0 0
    %1064 = vmatpush2.bf16.msra.mxu0 0
    %1065 = vmatprep.subr.bf16.mxu0 0
    %1066 = vmatpush2.bf16.msra.mxu0 0
    %1067 = vmatprep.subr.bf16.mxu0 0
    %1068 = vmatpush2.bf16.msra.mxu0 0
    %1069 = vmatprep.subr.bf16.mxu0 0
    %1070 = vmatpush2.bf16.msra.mxu0 0
    %1071 = vmatprep.subr.bf16.mxu0 0
    %1072 = vmatpush2.bf16.msra.mxu0 0
    %1073 = vmatprep.subr.bf16.mxu0 0
    %1074 = vmatpush2.bf16.msra.mxu0 0
    %1075 = vmatprep.mubr.bf16.mxu0 0
    %1076 = vmatmul.mubr.bf16.gmra.mxu0 %v1041
    %v1077 = vpop.f32.mrf.mxu0
    %v1078 = vadd.f32 0.0, %v1077
    %v1079 = vpop.f32.mrf.mxu0
    %v1080 = vpop.f32.mrf.mxu0
    %v1081 = vpop.f32.mrf.mxu0
    %1082 = vdwg.mxu0
    %v1083 = vadd.f32 %v1078, %v1026
    %v1084 = vmul.f32 %v1083, 0.01
    %v1085 = vmax.f32 %v1083, %v1084
    %v1086 = vld [vmem:[#allocation6 + $0xd0] sm:$0xf]
    %v1087 = vld [vmem:[#allocation6 + $0xd4] sm:$0xf]
    %v1088 = vld [vmem:[#allocation6 + $0xd8] sm:$0xf]
    %v1089 = vld [vmem:[#allocation6 + $0xdc] sm:$0xf]
    %v1090 = vld [vmem:[#allocation8 + $0x17] sm:$0x1]
    %v1091 = vpack.c.bf16 %v1085, %v1085
    %v1096 = vunpack.c.l.b16 %v1086
    %v1097 = vunpack.c.l.b16 %v1087
    %v1098 = vunpack.c.l.b16 %v1088
    %v1099 = vunpack.c.l.b16 %v1089
    %v1100 = vpack.c.b16 %v1097, %v1096
    %v1101 = vpack.c.b16 %v1099, %v1098
    %v1105 = vsel %vm81, %v1091, 0
    %1107 = vmatprep.subr.bf16.mxu0 0
    %1108 = vmatpush1.bf16.msra.mxu0 0
    %1109 = vmatprep.subr.bf16.mxu0 0
    %1110 = vmatpush1.bf16.msra.mxu0 0
    %1111 = vmatprep.subr.bf16.mxu0 0
    %1112 = vmatpush1.bf16.msra.mxu0 0
    %1113 = vmatprep.subr.bf16.mxu0 0
    %1114 = vmatpush1.bf16.msra.mxu0 0
    %1115 = vmatprep.subr.bf16.mxu0 0
    %1116 = vmatpush1.bf16.msra.mxu0 0
    %1117 = vmatprep.subr.bf16.mxu0 0
    %1118 = vmatpush1.bf16.msra.mxu0 0
    %1119 = vmatprep.subr.bf16.mxu0 0
    %1120 = vmatpush1.bf16.msra.mxu0 %v1101
    %1121 = vmatprep.subr.bf16.mxu0 0
    %1122 = vmatpush1.bf16.msra.mxu0 %v1100
    %1123 = vmatprep.subr.bf16.mxu0 0
    %1124 = vmatpush2.bf16.msra.mxu0 0
    %1125 = vmatprep.subr.bf16.mxu0 0
    %1126 = vmatpush2.bf16.msra.mxu0 0
    %1127 = vmatprep.subr.bf16.mxu0 0
    %1128 = vmatpush2.bf16.msra.mxu0 0
    %1129 = vmatprep.subr.bf16.mxu0 0
    %1130 = vmatpush2.bf16.msra.mxu0 0
    %1131 = vmatprep.subr.bf16.mxu0 0
    %1132 = vmatpush2.bf16.msra.mxu0 0
    %1133 = vmatprep.subr.bf16.mxu0 0
    %1134 = vmatpush2.bf16.msra.mxu0 0
    %1135 = vmatprep.subr.bf16.mxu0 0
    %1136 = vmatpush2.bf16.msra.mxu0 0
    %1137 = vmatprep.subr.bf16.mxu0 0
    %1138 = vmatpush2.bf16.msra.mxu0 0
    %1139 = vmatprep.mubr.bf16.mxu0 0
    %1140 = vmatmul.mubr.bf16.gmra.mxu0 %v1105
    %v1141 = vpop.f32.mrf.mxu0
    %v1142 = vadd.f32 0.0, %v1141
    %v1143 = vpop.f32.mrf.mxu0
    %v1144 = vpop.f32.mrf.mxu0
    %v1145 = vpop.f32.mrf.mxu0
    %1146 = vdwg.mxu0
    %v1147 = vadd.f32 %v1142, %v1090
    %v1148 = vmul.f32 %v1147, 0.01
    %v1149 = vmax.f32 %v1147, %v1148
    %v1150 = vld [vmem:[#allocation6 + $0xe0] sm:$0xf]
    %v1151 = vld [vmem:[#allocation6 + $0xe4] sm:$0xf]
    %v1152 = vld [vmem:[#allocation6 + $0xe8] sm:$0xf]
    %v1153 = vld [vmem:[#allocation6 + $0xec] sm:$0xf]
    %v1154 = vld [vmem:[#allocation8 + $0x18] sm:$0x1]
    %v1155 = vpack.c.bf16 %v1149, %v1149
    %v1160 = vunpack.c.l.b16 %v1150
    %v1161 = vunpack.c.l.b16 %v1151
    %v1162 = vunpack.c.l.b16 %v1152
    %v1163 = vunpack.c.l.b16 %v1153
    %v1164 = vpack.c.b16 %v1161, %v1160
    %v1165 = vpack.c.b16 %v1163, %v1162
    %v1169 = vsel %vm81, %v1155, 0
    %1171 = vmatprep.subr.bf16.mxu0 0
    %1172 = vmatpush1.bf16.msra.mxu0 0
    %1173 = vmatprep.subr.bf16.mxu0 0
    %1174 = vmatpush1.bf16.msra.mxu0 0
    %1175 = vmatprep.subr.bf16.mxu0 0
    %1176 = vmatpush1.bf16.msra.mxu0 0
    %1177 = vmatprep.subr.bf16.mxu0 0
    %1178 = vmatpush1.bf16.msra.mxu0 0
    %1179 = vmatprep.subr.bf16.mxu0 0
    %1180 = vmatpush1.bf16.msra.mxu0 0
    %1181 = vmatprep.subr.bf16.mxu0 0
    %1182 = vmatpush1.bf16.msra.mxu0 0
    %1183 = vmatprep.subr.bf16.mxu0 0
    %1184 = vmatpush1.bf16.msra.mxu0 %v1165
    %1185 = vmatprep.subr.bf16.mxu0 0
    %1186 = vmatpush1.bf16.msra.mxu0 %v1164
    %1187 = vmatprep.subr.bf16.mxu0 0
    %1188 = vmatpush2.bf16.msra.mxu0 0
    %1189 = vmatprep.subr.bf16.mxu0 0
    %1190 = vmatpush2.bf16.msra.mxu0 0
    %1191 = vmatprep.subr.bf16.mxu0 0
    %1192 = vmatpush2.bf16.msra.mxu0 0
    %1193 = vmatprep.subr.bf16.mxu0 0
    %1194 = vmatpush2.bf16.msra.mxu0 0
    %1195 = vmatprep.subr.bf16.mxu0 0
    %1196 = vmatpush2.bf16.msra.mxu0 0
    %1197 = vmatprep.subr.bf16.mxu0 0
    %1198 = vmatpush2.bf16.msra.mxu0 0
    %1199 = vmatprep.subr.bf16.mxu0 0
    %1200 = vmatpush2.bf16.msra.mxu0 0
    %1201 = vmatprep.subr.bf16.mxu0 0
    %1202 = vmatpush2.bf16.msra.mxu0 0
    %1203 = vmatprep.mubr.bf16.mxu0 0
    %1204 = vmatmul.mubr.bf16.gmra.mxu0 %v1169
    %v1205 = vpop.f32.mrf.mxu0
    %v1206 = vadd.f32 0.0, %v1205
    %v1207 = vpop.f32.mrf.mxu0
    %v1208 = vpop.f32.mrf.mxu0
    %v1209 = vpop.f32.mrf.mxu0
    %1210 = vdwg.mxu0
    %v1211 = vadd.f32 %v1206, %v1154
    %v1212 = vmul.f32 %v1211, 0.01
    %v1213 = vmax.f32 %v1211, %v1212
    %v1214 = vld [vmem:[#allocation6 + $0xf0] sm:$0xf]
    %v1215 = vld [vmem:[#allocation6 + $0xf4] sm:$0xf]
    %v1216 = vld [vmem:[#allocation6 + $0xf8] sm:$0xf]
    %v1217 = vld [vmem:[#allocation6 + $0xfc] sm:$0xf]
    %v1218 = vld [vmem:[#allocation8 + $0x19] sm:$0x1]
    %v1219 = vpack.c.bf16 %v1213, %v1213
    %v1224 = vunpack.c.l.b16 %v1214
    %v1225 = vunpack.c.l.b16 %v1215
    %v1226 = vunpack.c.l.b16 %v1216
    %v1227 = vunpack.c.l.b16 %v1217
    %v1228 = vpack.c.b16 %v1225, %v1224
    %v1229 = vpack.c.b16 %v1227, %v1226
    %v1233 = vsel %vm81, %v1219, 0
    %1235 = vmatprep.subr.bf16.mxu0 0
    %1236 = vmatpush1.bf16.msra.mxu0 0
    %1237 = vmatprep.subr.bf16.mxu0 0
    %1238 = vmatpush1.bf16.msra.mxu0 0
    %1239 = vmatprep.subr.bf16.mxu0 0
    %1240 = vmatpush1.bf16.msra.mxu0 0
    %1241 = vmatprep.subr.bf16.mxu0 0
    %1242 = vmatpush1.bf16.msra.mxu0 0
    %1243 = vmatprep.subr.bf16.mxu0 0
    %1244 = vmatpush1.bf16.msra.mxu0 0
    %1245 = vmatprep.subr.bf16.mxu0 0
    %1246 = vmatpush1.bf16.msra.mxu0 0
    %1247 = vmatprep.subr.bf16.mxu0 0
    %1248 = vmatpush1.bf16.msra.mxu0 %v1229
    %1249 = vmatprep.subr.bf16.mxu0 0
    %1250 = vmatpush1.bf16.msra.mxu0 %v1228
    %1251 = vmatprep.subr.bf16.mxu0 0
    %1252 = vmatpush2.bf16.msra.mxu0 0
    %1253 = vmatprep.subr.bf16.mxu0 0
    %1254 = vmatpush2.bf16.msra.mxu0 0
    %1255 = vmatprep.subr.bf16.mxu0 0
    %1256 = vmatpush2.bf16.msra.mxu0 0
    %1257 = vmatprep.subr.bf16.mxu0 0
    %1258 = vmatpush2.bf16.msra.mxu0 0
    %1259 = vmatprep.subr.bf16.mxu0 0
    %1260 = vmatpush2.bf16.msra.mxu0 0
    %1261 = vmatprep.subr.bf16.mxu0 0
    %1262 = vmatpush2.bf16.msra.mxu0 0
    %1263 = vmatprep.subr.bf16.mxu0 0
    %1264 = vmatpush2.bf16.msra.mxu0 0
    %1265 = vmatprep.subr.bf16.mxu0 0
    %1266 = vmatpush2.bf16.msra.mxu0 0
    %1267 = vmatprep.mubr.bf16.mxu0 0
    %1268 = vmatmul.mubr.bf16.gmra.mxu0 %v1233
    %v1269 = vpop.f32.mrf.mxu0
    %v1270 = vadd.f32 0.0, %v1269
    %v1271 = vpop.f32.mrf.mxu0
    %v1272 = vpop.f32.mrf.mxu0
    %v1273 = vpop.f32.mrf.mxu0
    %1274 = vdwg.mxu0
    %v1275 = vadd.f32 %v1270, %v1218
    %v1276 = vmul.f32 %v1275, 0.01
    %v1277 = vmax.f32 %v1275, %v1276
    %v1278 = vld [vmem:[#allocation6 + $0x100] sm:$0xf]
    %v1279 = vld [vmem:[#allocation6 + $0x104] sm:$0xf]
    %v1280 = vld [vmem:[#allocation6 + $0x108] sm:$0xf]
    %v1281 = vld [vmem:[#allocation6 + $0x10c] sm:$0xf]
    %v1282 = vld [vmem:[#allocation8 + $0x1a] sm:$0x1]
    %v1283 = vpack.c.bf16 %v1277, %v1277
    %v1288 = vunpack.c.l.b16 %v1278
    %v1289 = vunpack.c.l.b16 %v1279
    %v1290 = vunpack.c.l.b16 %v1280
    %v1291 = vunpack.c.l.b16 %v1281
    %v1292 = vpack.c.b16 %v1289, %v1288
    %v1293 = vpack.c.b16 %v1291, %v1290
    %v1297 = vsel %vm81, %v1283, 0
    %1299 = vmatprep.subr.bf16.mxu0 0
    %1300 = vmatpush1.bf16.msra.mxu0 0
    %1301 = vmatprep.subr.bf16.mxu0 0
    %1302 = vmatpush1.bf16.msra.mxu0 0
    %1303 = vmatprep.subr.bf16.mxu0 0
    %1304 = vmatpush1.bf16.msra.mxu0 0
    %1305 = vmatprep.subr.bf16.mxu0 0
    %1306 = vmatpush1.bf16.msra.mxu0 0
    %1307 = vmatprep.subr.bf16.mxu0 0
    %1308 = vmatpush1.bf16.msra.mxu0 0
    %1309 = vmatprep.subr.bf16.mxu0 0
    %1310 = vmatpush1.bf16.msra.mxu0 0
    %1311 = vmatprep.subr.bf16.mxu0 0
    %1312 = vmatpush1.bf16.msra.mxu0 %v1293
    %1313 = vmatprep.subr.bf16.mxu0 0
    %1314 = vmatpush1.bf16.msra.mxu0 %v1292
    %1315 = vmatprep.subr.bf16.mxu0 0
    %1316 = vmatpush2.bf16.msra.mxu0 0
    %1317 = vmatprep.subr.bf16.mxu0 0
    %1318 = vmatpush2.bf16.msra.mxu0 0
    %1319 = vmatprep.subr.bf16.mxu0 0
    %1320 = vmatpush2.bf16.msra.mxu0 0
    %1321 = vmatprep.subr.bf16.mxu0 0
    %1322 = vmatpush2.bf16.msra.mxu0 0
    %1323 = vmatprep.subr.bf16.mxu0 0
    %1324 = vmatpush2.bf16.msra.mxu0 0
    %1325 = vmatprep.subr.bf16.mxu0 0
    %1326 = vmatpush2.bf16.msra.mxu0 0
    %1327 = vmatprep.subr.bf16.mxu0 0
    %1328 = vmatpush2.bf16.msra.mxu0 0
    %1329 = vmatprep.subr.bf16.mxu0 0
    %1330 = vmatpush2.bf16.msra.mxu0 0
    %1331 = vmatprep.mubr.bf16.mxu0 0
    %1332 = vmatmul.mubr.bf16.gmra.mxu0 %v1297
    %v1333 = vpop.f32.mrf.mxu0
    %v1334 = vadd.f32 0.0, %v1333
    %v1335 = vpop.f32.mrf.mxu0
    %v1336 = vpop.f32.mrf.mxu0
    %v1337 = vpop.f32.mrf.mxu0
    %1338 = vdwg.mxu0
    %v1339 = vadd.f32 %v1334, %v1282
    %v1340 = vmul.f32 %v1339, 0.01
    %v1341 = vmax.f32 %v1339, %v1340
    %v1342 = vld [vmem:[#allocation6 + $0x110] sm:$0xf]
    %v1343 = vld [vmem:[#allocation6 + $0x114] sm:$0xf]
    %v1344 = vld [vmem:[#allocation6 + $0x118] sm:$0xf]
    %v1345 = vld [vmem:[#allocation6 + $0x11c] sm:$0xf]
    %v1346 = vld [vmem:[#allocation8 + $0x1b] sm:$0x1]
    %v1347 = vpack.c.bf16 %v1341, %v1341
    %v1352 = vunpack.c.l.b16 %v1342
    %v1353 = vunpack.c.l.b16 %v1343
    %v1354 = vunpack.c.l.b16 %v1344
    %v1355 = vunpack.c.l.b16 %v1345
    %v1356 = vpack.c.b16 %v1353, %v1352
    %v1357 = vpack.c.b16 %v1355, %v1354
    %v1361 = vsel %vm81, %v1347, 0
    %1363 = vmatprep.subr.bf16.mxu0 0
    %1364 = vmatpush1.bf16.msra.mxu0 0
    %1365 = vmatprep.subr.bf16.mxu0 0
    %1366 = vmatpush1.bf16.msra.mxu0 0
    %1367 = vmatprep.subr.bf16.mxu0 0
    %1368 = vmatpush1.bf16.msra.mxu0 0
    %1369 = vmatprep.subr.bf16.mxu0 0
    %1370 = vmatpush1.bf16.msra.mxu0 0
    %1371 = vmatprep.subr.bf16.mxu0 0
    %1372 = vmatpush1.bf16.msra.mxu0 0
    %1373 = vmatprep.subr.bf16.mxu0 0
    %1374 = vmatpush1.bf16.msra.mxu0 0
    %1375 = vmatprep.subr.bf16.mxu0 0
    %1376 = vmatpush1.bf16.msra.mxu0 %v1357
    %1377 = vmatprep.subr.bf16.mxu0 0
    %1378 = vmatpush1.bf16.msra.mxu0 %v1356
    %1379 = vmatprep.subr.bf16.mxu0 0
    %1380 = vmatpush2.bf16.msra.mxu0 0
    %1381 = vmatprep.subr.bf16.mxu0 0
    %1382 = vmatpush2.bf16.msra.mxu0 0
    %1383 = vmatprep.subr.bf16.mxu0 0
    %1384 = vmatpush2.bf16.msra.mxu0 0
    %1385 = vmatprep.subr.bf16.mxu0 0
    %1386 = vmatpush2.bf16.msra.mxu0 0
    %1387 = vmatprep.subr.bf16.mxu0 0
    %1388 = vmatpush2.bf16.msra.mxu0 0
    %1389 = vmatprep.subr.bf16.mxu0 0
    %1390 = vmatpush2.bf16.msra.mxu0 0
    %1391 = vmatprep.subr.bf16.mxu0 0
    %1392 = vmatpush2.bf16.msra.mxu0 0
    %1393 = vmatprep.subr.bf16.mxu0 0
    %1394 = vmatpush2.bf16.msra.mxu0 0
    %1395 = vmatprep.mubr.bf16.mxu0 0
    %1396 = vmatmul.mubr.bf16.gmra.mxu0 %v1361
    %v1397 = vpop.f32.mrf.mxu0
    %v1398 = vadd.f32 0.0, %v1397
    %v1399 = vpop.f32.mrf.mxu0
    %v1400 = vpop.f32.mrf.mxu0
    %v1401 = vpop.f32.mrf.mxu0
    %1402 = vdwg.mxu0
    %v1403 = vadd.f32 %v1398, %v1346
    %v1404 = vmul.f32 %v1403, 0.01
    %v1405 = vmax.f32 %v1403, %v1404
    %v1406 = vld [vmem:[#allocation6 + $0x120] sm:$0xf]
    %v1407 = vld [vmem:[#allocation6 + $0x124] sm:$0xf]
    %v1408 = vld [vmem:[#allocation6 + $0x128] sm:$0xf]
    %v1409 = vld [vmem:[#allocation6 + $0x12c] sm:$0xf]
    %v1410 = vld [vmem:[#allocation8 + $0x1c] sm:$0x1]
    %v1411 = vpack.c.bf16 %v1405, %v1405
    %v1416 = vunpack.c.l.b16 %v1406
    %v1417 = vunpack.c.l.b16 %v1407
    %v1418 = vunpack.c.l.b16 %v1408
    %v1419 = vunpack.c.l.b16 %v1409
    %v1420 = vpack.c.b16 %v1417, %v1416
    %v1421 = vpack.c.b16 %v1419, %v1418
    %v1425 = vsel %vm81, %v1411, 0
    %1427 = vmatprep.subr.bf16.mxu0 0
    %1428 = vmatpush1.bf16.msra.mxu0 0
    %1429 = vmatprep.subr.bf16.mxu0 0
    %1430 = vmatpush1.bf16.msra.mxu0 0
    %1431 = vmatprep.subr.bf16.mxu0 0
    %1432 = vmatpush1.bf16.msra.mxu0 0
    %1433 = vmatprep.subr.bf16.mxu0 0
    %1434 = vmatpush1.bf16.msra.mxu0 0
    %1435 = vmatprep.subr.bf16.mxu0 0
    %1436 = vmatpush1.bf16.msra.mxu0 0
    %1437 = vmatprep.subr.bf16.mxu0 0
    %1438 = vmatpush1.bf16.msra.mxu0 0
    %1439 = vmatprep.subr.bf16.mxu0 0
    %1440 = vmatpush1.bf16.msra.mxu0 %v1421
    %1441 = vmatprep.subr.bf16.mxu0 0
    %1442 = vmatpush1.bf16.msra.mxu0 %v1420
    %1443 = vmatprep.subr.bf16.mxu0 0
    %1444 = vmatpush2.bf16.msra.mxu0 0
    %1445 = vmatprep.subr.bf16.mxu0 0
    %1446 = vmatpush2.bf16.msra.mxu0 0
    %1447 = vmatprep.subr.bf16.mxu0 0
    %1448 = vmatpush2.bf16.msra.mxu0 0
    %1449 = vmatprep.subr.bf16.mxu0 0
    %1450 = vmatpush2.bf16.msra.mxu0 0
    %1451 = vmatprep.subr.bf16.mxu0 0
    %1452 = vmatpush2.bf16.msra.mxu0 0
    %1453 = vmatprep.subr.bf16.mxu0 0
    %1454 = vmatpush2.bf16.msra.mxu0 0
    %1455 = vmatprep.subr.bf16.mxu0 0
    %1456 = vmatpush2.bf16.msra.mxu0 0
    %1457 = vmatprep.subr.bf16.mxu0 0
    %1458 = vmatpush2.bf16.msra.mxu0 0
    %1459 = vmatprep.mubr.bf16.mxu0 0
    %1460 = vmatmul.mubr.bf16.gmra.mxu0 %v1425
    %v1461 = vpop.f32.mrf.mxu0
    %v1462 = vadd.f32 0.0, %v1461
    %v1463 = vpop.f32.mrf.mxu0
    %v1464 = vpop.f32.mrf.mxu0
    %v1465 = vpop.f32.mrf.mxu0
    %1466 = vdwg.mxu0
    %v1467 = vadd.f32 %v1462, %v1410
    %v1468 = vmul.f32 %v1467, 0.01
    %v1469 = vmax.f32 %v1467, %v1468
    %v1470 = vld [vmem:[#allocation6 + $0x130] sm:$0xf]
    %v1471 = vld [vmem:[#allocation6 + $0x134] sm:$0xf]
    %v1472 = vld [vmem:[#allocation6 + $0x138] sm:$0xf]
    %v1473 = vld [vmem:[#allocation6 + $0x13c] sm:$0xf]
    %v1474 = vld [vmem:[#allocation8 + $0x1d] sm:$0x1]
    %v1475 = vpack.c.bf16 %v1469, %v1469
    %v1480 = vunpack.c.l.b16 %v1470
    %v1481 = vunpack.c.l.b16 %v1471
    %v1482 = vunpack.c.l.b16 %v1472
    %v1483 = vunpack.c.l.b16 %v1473
    %v1484 = vpack.c.b16 %v1481, %v1480
    %v1485 = vpack.c.b16 %v1483, %v1482
    %v1489 = vsel %vm81, %v1475, 0
    %1491 = vmatprep.subr.bf16.mxu0 0
    %1492 = vmatpush1.bf16.msra.mxu0 0
    %1493 = vmatprep.subr.bf16.mxu0 0
    %1494 = vmatpush1.bf16.msra.mxu0 0
    %1495 = vmatprep.subr.bf16.mxu0 0
    %1496 = vmatpush1.bf16.msra.mxu0 0
    %1497 = vmatprep.subr.bf16.mxu0 0
    %1498 = vmatpush1.bf16.msra.mxu0 0
    %1499 = vmatprep.subr.bf16.mxu0 0
    %1500 = vmatpush1.bf16.msra.mxu0 0
    %1501 = vmatprep.subr.bf16.mxu0 0
    %1502 = vmatpush1.bf16.msra.mxu0 0
    %1503 = vmatprep.subr.bf16.mxu0 0
    %1504 = vmatpush1.bf16.msra.mxu0 %v1485
    %1505 = vmatprep.subr.bf16.mxu0 0
    %1506 = vmatpush1.bf16.msra.mxu0 %v1484
    %1507 = vmatprep.subr.bf16.mxu0 0
    %1508 = vmatpush2.bf16.msra.mxu0 0
    %1509 = vmatprep.subr.bf16.mxu0 0
    %1510 = vmatpush2.bf16.msra.mxu0 0
    %1511 = vmatprep.subr.bf16.mxu0 0
    %1512 = vmatpush2.bf16.msra.mxu0 0
    %1513 = vmatprep.subr.bf16.mxu0 0
    %1514 = vmatpush2.bf16.msra.mxu0 0
    %1515 = vmatprep.subr.bf16.mxu0 0
    %1516 = vmatpush2.bf16.msra.mxu0 0
    %1517 = vmatprep.subr.bf16.mxu0 0
    %1518 = vmatpush2.bf16.msra.mxu0 0
    %1519 = vmatprep.subr.bf16.mxu0 0
    %1520 = vmatpush2.bf16.msra.mxu0 0
    %1521 = vmatprep.subr.bf16.mxu0 0
    %1522 = vmatpush2.bf16.msra.mxu0 0
    %1523 = vmatprep.mubr.bf16.mxu0 0
    %1524 = vmatmul.mubr.bf16.gmra.mxu0 %v1489
    %v1525 = vpop.f32.mrf.mxu0
    %v1526 = vadd.f32 0.0, %v1525
    %v1527 = vpop.f32.mrf.mxu0
    %v1528 = vpop.f32.mrf.mxu0
    %v1529 = vpop.f32.mrf.mxu0
    %1530 = vdwg.mxu0
    %v1531 = vadd.f32 %v1526, %v1474
    %v1532 = vmul.f32 %v1531, 0.01
    %v1533 = vmax.f32 %v1531, %v1532
    %vm1534 = vcmask 122880
    %1535 = vst.msk [vmem:[#allocation9] sm:$0x1] %vm1534, %v1533
    // Predicated region
    $region26: #{net_forward.1} parent=1 // pred_check
      _
    $region27: #{net_forward.1} parent=1 // pred_check_branch
      %1537 = sbr.rel (0) target = $region29
    $region28: #{net_forward.1} parent=1 // pred_region
      %s1539 = ssub.s32 16, 16
      %1540 = vsyncadd [#allocation5], %s1539
      %s1542 = sshll.u32 [#allocation9], 4
      %s1543 = int_to_ptr.vmem [resolvable:$true] %s1542
      %1545 = dma.vmem_to_hbm [thread:$0]  %s1543, 16, %s3, [#allocation5]
    $region29: #{net_forward.1} parent=1 // pred_fallthru
      _
    // Predicated region
    $region30: #{net_forward.1} parent=1 // pred_check
      _
    $region31: #{net_forward.1} parent=1 // pred_check_branch
      %1547 = sbr.rel (0) target = $region33
    $region32: #{net_forward.1} parent=1 // pred_region
      %1548 = dma.done [#allocation5], 16
    $region33: #{net_forward.1} parent=1 // pred_fallthru
      _
    %1549 = vsyncpa [#allocation4], 1
    %1550 = vsyncpa [#allocation7], 1
    %1551 = vsyncpa [#allocation5], 1

</llo_original>
